<compile_context>
chip_gen: v7x
topology: tpu7x:2x2x1
jax: 0.10.0
libtpu: 0.0.40
codegen_flags: <defaults>
</compile_context>

<pallas_src>
import functools

import jax
import jax.numpy as jnp
from jax import lax
from jax.experimental import pallas as pl
from jax.experimental.pallas import tpu as pltpu


# ---------------------------------------------------------------------------
# Fused kernel: qkv projection + multi-head attention + output projection
# ---------------------------------------------------------------------------

def _fused_attention_kernel(x_ref, wqkv_ref, wproj_ref, bproj_ref, o_ref,
                            attn_scratch, *, num_heads, head_dim,
                            tokens_per_batch, scale):
    # x_ref:        (R, D)   bf16  R = batches_per_step * N rows (batch folded into M)
    # wqkv_ref:     (D, 3D)  bf16  qkv weight, (in, out) layout, resident
    # wproj_ref:    (D, D)   bf16  proj weight, (in, out) layout, resident
    # bproj_ref:    (1, D)   f32   proj bias
    # o_ref:        (R, D)   f32   output rows
    # attn_scratch: (R, D)   f32   VMEM slab for concatenated per-head outputs
    R, D = x_ref.shape
    N = tokens_per_batch
    hd = head_dim
    n_batches = R // N

    # --- QKV projection: one MXU matmul over all rows in this step ----------
    qkv = jnp.dot(x_ref[...], wqkv_ref[...],
                  preferred_element_type=jnp.float32)          # (R, 3D) f32
    qkv_bf = qkv.astype(jnp.bfloat16)                          # single cast; slices below are bf16

    # Contract last dims of q and k: q . k^T with no explicit transpose
    # (same dot_general pl.dot(q, k, trans_b=True) would emit).
    contract_last = (((1,), (1,)), ((), ()))

    # --- per (batch, head) attention, written in place into the VMEM slab ---
    # qkv columns are laid out [3][num_heads][head_dim] (matches the PyTorch
    # reshape(B, N, 3, H, hd)), so the slab already matches
    # x.transpose(1, 2).reshape(B, N, -1).
    for b in range(n_batches):
        r0 = b * N
        for h in range(num_heads):
            q = qkv_bf[r0:r0 + N, h * hd:(h + 1) * hd]                     # (N, hd)
            k = qkv_bf[r0:r0 + N, D + h * hd:D + (h + 1) * hd]             # (N, hd)
            v = qkv_bf[r0:r0 + N, 2 * D + h * hd:2 * D + (h + 1) * hd]     # (N, hd)

            s = lax.dot_general(q, k, contract_last,
                                preferred_element_type=jnp.float32) * scale  # (N, N) f32

            # numerically-stable softmax in f32; normalization deferred
            m = jnp.max(s, axis=-1, keepdims=True)
            e = jnp.exp(s - m)                                              # (N, N)
            l = jnp.sum(e, axis=-1, keepdims=True)                          # (N, 1)

            o_h = jnp.dot(e.astype(jnp.bfloat16), v,
                          preferred_element_type=jnp.float32)               # (N, hd)
            attn_scratch[r0:r0 + N, h * hd:(h + 1) * hd] = \
                o_h * pl.reciprocal(l, approx=True)

    # --- output projection over all rows at once (+ bias); proj_drop p=0 ----
    proj = jnp.dot(attn_scratch[...].astype(jnp.bfloat16), wproj_ref[...],
                   preferred_element_type=jnp.float32)                      # (R, D)
    o_ref[...] = proj + bproj_ref[...]


# ---------------------------------------------------------------------------
# pallas_call wrapper
# ---------------------------------------------------------------------------

def _default_grid_splits(batch):
    """Single step on 1-TC chips (v5e/v6e); 2-way parallel split on v7x."""
    try:
        kind = jax.devices()[0].device_kind.lower()
    except Exception:  # pragma: no cover - defensive
        kind = ""
    splits = 2 if "v7" in kind else 1   # v7x has 2 TensorCores per chip
    while splits > 1 and batch % splits:
        splits -= 1
    return max(splits, 1)


def attention_forward(x, params, num_heads, grid_splits=None):
    B, N, D = x.shape
    head_dim = D // num_heads
    scale = head_dim ** (-0.5)

    if grid_splits is None:
        grid_splits = _default_grid_splits(B)
    assert B % grid_splits == 0, "grid_splits must divide the batch"
    rows_per_step = (B // grid_splits) * N

    # Fold batch into the matmul M dimension; stream activations in bf16.
    x2d = x.reshape(B * N, D).astype(jnp.bfloat16)

    kernel = functools.partial(
        _fused_attention_kernel,
        num_heads=num_heads, head_dim=head_dim,
        tokens_per_batch=N, scale=scale)

    out2d = pl.pallas_call(
        kernel,
        out_shape=jax.ShapeDtypeStruct((B * N, D), jnp.float32),
        grid=(grid_splits,),
        in_specs=[
            pl.BlockSpec((rows_per_step, D), lambda g: (g, 0)),   # x rows for this step
            pl.BlockSpec((D, 3 * D), lambda g: (0, 0)),           # w_qkv (resident)
            pl.BlockSpec((D, D), lambda g: (0, 0)),               # w_proj (resident)
            pl.BlockSpec((1, D), lambda g: (0, 0)),               # b_proj (resident)
        ],
        out_specs=pl.BlockSpec((rows_per_step, D), lambda g: (g, 0)),
        scratch_shapes=[pltpu.VMEM((rows_per_step, D), jnp.float32)],
        compiler_params=pltpu.CompilerParams(
            dimension_semantics=("parallel",),        # lets v7x split the steps over 2 TCs
            vmem_limit_bytes=32 * 1024 * 1024,        # above v5e's 16 MiB scoped default
        ),
    )(x2d, params["w_qkv_t"], params["w_proj_t"], params["b_proj"])

    return out2d.reshape(B, N, D)


# ---------------------------------------------------------------------------
# Pure-JAX reference mirroring the PyTorch forward (mask=None, dropout=0)
# ---------------------------------------------------------------------------

def attention_reference(x, params, num_heads):
    B, N, D = x.shape
    head_dim = D // num_heads
    scale = head_dim ** (-0.5)
    w_qkv = params["w_qkv_t"].astype(jnp.float32)
    w_proj = params["w_proj_t"].astype(jnp.float32)
    b_proj = params["b_proj"].astype(jnp.float32)

    qkv = x @ w_qkv
    qkv = qkv.reshape(B, N, 3, num_heads, head_dim).transpose(2, 0, 3, 1, 4)
    q, k, v = qkv[0], qkv[1], qkv[2]
    attn = (q * scale) @ jnp.swapaxes(k, -2, -1)
    attn = jax.nn.softmax(attn, axis=-1)
    o = attn @ v
    o = jnp.transpose(o, (0, 2, 1, 3)).reshape(B, N, D)
    return o @ w_proj + b_proj[0]


# ---------------------------------------------------------------------------
# Main
# ---------------------------------------------------------------------------

if __name__ == "__main__":
    B, N, D = 2, 8, 32
    num_heads = 4

    key = jax.random.PRNGKey(0)
    kx, kw1, kw2, kb = jax.random.split(key, 4)

    x = jax.random.normal(kx, (B, N, D), dtype=jnp.float32)

    # PyTorch stores Linear weight as (out, in); we keep the transposed
    # (in, out) layout for the kernel. Weights stored in bf16 (MXU operand
    # path), bias stays f32.
    params = {
        "w_qkv_t": (0.05 * jax.random.normal(kw1, (D, 3 * D), dtype=jnp.float32)
                    ).astype(jnp.bfloat16),
        "w_proj_t": (0.05 * jax.random.normal(kw2, (D, D), dtype=jnp.float32)
                     ).astype(jnp.bfloat16),
        "b_proj": 0.01 * jax.random.normal(kb, (1, D), dtype=jnp.float32),
    }

    out = attention_forward(x, params, num_heads)
    out = jax.block_until_ready(out)

    ref = attention_reference(x, params, num_heads)
    assert out.shape == (B, N, D)
    # bf16 MXU operands/activations + approx reciprocal => bf16-level tolerance.
    assert jnp.allclose(out, ref, atol=2e-2, rtol=2e-2), "mismatch vs reference"

    print("KERNEL_OK")
</pallas_src>

<mosaic_0001>
module attributes {stable_mosaic.version = 11 : i64} {
  func.func @_fused_attention_kernel(%arg0: i32, %arg1: memref<16x32xbf16, #tpu.memory_space<vmem>>, %arg2: memref<32x96xbf16, #tpu.memory_space<vmem>>, %arg3: memref<32x32xbf16, #tpu.memory_space<vmem>>, %arg4: memref<1x32xf32, #tpu.memory_space<vmem>>, %arg5: memref<16x32xf32, #tpu.memory_space<vmem>>, %arg6: memref<16x32xf32, #tpu.memory_space<vmem>>) attributes {dimension_semantics = [#tpu.dimension_semantics<parallel>], iteration_bounds = array<i64: 1>, scalar_prefetch = 0 : i64, scratch_operands = 1 : i64, tpu.core_type = #tpu.core_type<tc>, window_params = [{transform_indices = @transform_0, window_bounds = array<i64: 16, 32>}, {pipeline_mode = #tpu.pipeline_mode<synchronous>, transform_indices = @transform_1, window_bounds = array<i64: 32, 96>}, {pipeline_mode = #tpu.pipeline_mode<synchronous>, transform_indices = @transform_2, window_bounds = array<i64: 32, 32>}, {pipeline_mode = #tpu.pipeline_mode<synchronous>, transform_indices = @transform_3, window_bounds = array<i64: 1, 32>}, {transform_indices = @transform_4, window_bounds = array<i64: 16, 32>}]} {
    %c0 = arith.constant 0 : index
    %c0_0 = arith.constant 0 : index
    %0 = vector.load %arg1[%c0, %c0_0] : memref<16x32xbf16, #tpu.memory_space<vmem>>, vector<16x32xbf16>
    %c0_1 = arith.constant 0 : index
    %c0_2 = arith.constant 0 : index
    %1 = vector.load %arg2[%c0_1, %c0_2] : memref<32x96xbf16, #tpu.memory_space<vmem>>, vector<32x96xbf16>
    %cst = arith.constant dense<0.000000e+00> : vector<16x96xf32>
    %2 = tpu.matmul %0, %1, %cst {dimension_numbers = #tpu.dot_dimension_numbers<[1], [0], [0], [1], [0, 0, 1, 1], [], []>} : vector<16x32xbf16>, vector<32x96xbf16>, vector<16x96xf32> -> vector<16x96xf32>
    %3 = arith.truncf %2 : vector<16x96xf32> to vector<16x96xbf16>
    %4 = vector.extract_strided_slice %3 {offsets = [0, 0], sizes = [8, 8], strides = [1, 1]} : vector<16x96xbf16> to vector<8x8xbf16>
    %5 = vector.extract_strided_slice %3 {offsets = [0, 32], sizes = [8, 8], strides = [1, 1]} : vector<16x96xbf16> to vector<8x8xbf16>
    %6 = vector.extract_strided_slice %3 {offsets = [0, 64], sizes = [8, 8], strides = [1, 1]} : vector<16x96xbf16> to vector<8x8xbf16>
    %cst_3 = arith.constant dense<0.000000e+00> : vector<8x8xf32>
    %7 = tpu.matmul %4, %5, %cst_3 {dimension_numbers = #tpu.dot_dimension_numbers<[1], [1], [0], [0], [0, 0, 1, 0], [], []>} : vector<8x8xbf16>, vector<8x8xbf16>, vector<8x8xf32> -> vector<8x8xf32>
    %cst_4 = arith.constant 0.353553385 : f32
    %8 = vector.broadcast %cst_4 : f32 to vector<8x8xf32>
    %9 = arith.mulf %7, %8 : vector<8x8xf32>
    %cst_5 = arith.constant dense<0xFF800000> : vector<8xf32>
    %10 = vector.multi_reduction <maximumf>, %9, %cst_5 [1] : vector<8x8xf32> to vector<8xf32>
    %11 = vector.shape_cast %10 : vector<8xf32> to vector<8x1xf32>
    %12 = vector.broadcast %11 : vector<8x1xf32> to vector<8x8xf32>
    %13 = arith.subf %9, %12 : vector<8x8xf32>
    %14 = math.exp %13 : vector<8x8xf32>
    %cst_6 = arith.constant dense<0.000000e+00> : vector<8xf32>
    %15 = vector.multi_reduction <add>, %14, %cst_6 [1] : vector<8x8xf32> to vector<8xf32>
    %16 = vector.shape_cast %15 : vector<8xf32> to vector<8x1xf32>
    %17 = arith.truncf %14 : vector<8x8xf32> to vector<8x8xbf16>
    %cst_7 = arith.constant dense<0.000000e+00> : vector<8x8xf32>
    %18 = tpu.matmul %17, %6, %cst_7 {dimension_numbers = #tpu.dot_dimension_numbers<[1], [0], [0], [1], [0, 0, 1, 1], [], []>} : vector<8x8xbf16>, vector<8x8xbf16>, vector<8x8xf32> -> vector<8x8xf32>
    %19 = tpu.reciprocal %16 {approx = true} : vector<8x1xf32> -> vector<8x1xf32>
    %20 = vector.broadcast %19 : vector<8x1xf32> to vector<8x8xf32>
    %21 = arith.mulf %18, %20 : vector<8x8xf32>
    %c0_8 = arith.constant 0 : index
    %c0_9 = arith.constant 0 : index
    %22 = vector.load %arg6[%c0_8, %c0_9] : memref<16x32xf32, #tpu.memory_space<vmem>>, vector<8x8xf32>
    tpu.vector_store %arg6[%c0_8, %c0_9], %21 {strides = array<i32>} : memref<16x32xf32, #tpu.memory_space<vmem>>, vector<8x8xf32>,
    %23 = vector.extract_strided_slice %3 {offsets = [0, 8], sizes = [8, 8], strides = [1, 1]} : vector<16x96xbf16> to vector<8x8xbf16>
    %24 = vector.extract_strided_slice %3 {offsets = [0, 40], sizes = [8, 8], strides = [1, 1]} : vector<16x96xbf16> to vector<8x8xbf16>
    %25 = vector.extract_strided_slice %3 {offsets = [0, 72], sizes = [8, 8], strides = [1, 1]} : vector<16x96xbf16> to vector<8x8xbf16>
    %cst_10 = arith.constant dense<0.000000e+00> : vector<8x8xf32>
    %26 = tpu.matmul %23, %24, %cst_10 {dimension_numbers = #tpu.dot_dimension_numbers<[1], [1], [0], [0], [0, 0, 1, 0], [], []>} : vector<8x8xbf16>, vector<8x8xbf16>, vector<8x8xf32> -> vector<8x8xf32>
    %cst_11 = arith.constant 0.353553385 : f32
    %27 = vector.broadcast %cst_11 : f32 to vector<8x8xf32>
    %28 = arith.mulf %26, %27 : vector<8x8xf32>
    %cst_12 = arith.constant dense<0xFF800000> : vector<8xf32>
    %29 = vector.multi_reduction <maximumf>, %28, %cst_12 [1] : vector<8x8xf32> to vector<8xf32>
    %30 = vector.shape_cast %29 : vector<8xf32> to vector<8x1xf32>
    %31 = vector.broadcast %30 : vector<8x1xf32> to vector<8x8xf32>
    %32 = arith.subf %28, %31 : vector<8x8xf32>
    %33 = math.exp %32 : vector<8x8xf32>
    %cst_13 = arith.constant dense<0.000000e+00> : vector<8xf32>
    %34 = vector.multi_reduction <add>, %33, %cst_13 [1] : vector<8x8xf32> to vector<8xf32>
    %35 = vector.shape_cast %34 : vector<8xf32> to vector<8x1xf32>
    %36 = arith.truncf %33 : vector<8x8xf32> to vector<8x8xbf16>
    %cst_14 = arith.constant dense<0.000000e+00> : vector<8x8xf32>
    %37 = tpu.matmul %36, %25, %cst_14 {dimension_numbers = #tpu.dot_dimension_numbers<[1], [0], [0], [1], [0, 0, 1, 1], [], []>} : vector<8x8xbf16>, vector<8x8xbf16>, vector<8x8xf32> -> vector<8x8xf32>
    %38 = tpu.reciprocal %35 {approx = true} : vector<8x1xf32> -> vector<8x1xf32>
    %39 = vector.broadcast %38 : vector<8x1xf32> to vector<8x8xf32>
    %40 = arith.mulf %37, %39 : vector<8x8xf32>
    %c0_15 = arith.constant 0 : index
    %c8 = arith.constant 8 : index
    %41 = vector.load %arg6[%c0_15, %c8] : memref<16x32xf32, #tpu.memory_space<vmem>>, vector<8x8xf32>
    tpu.vector_store %arg6[%c0_15, %c8], %40 {strides = array<i32>} : memref<16x32xf32, #tpu.memory_space<vmem>>, vector<8x8xf32>,
    %42 = vector.extract_strided_slice %3 {offsets = [0, 16], sizes = [8, 8], strides = [1, 1]} : vector<16x96xbf16> to vector<8x8xbf16>
    %43 = vector.extract_strided_slice %3 {offsets = [0, 48], sizes = [8, 8], strides = [1, 1]} : vector<16x96xbf16> to vector<8x8xbf16>
    %44 = vector.extract_strided_slice %3 {offsets = [0, 80], sizes = [8, 8], strides = [1, 1]} : vector<16x96xbf16> to vector<8x8xbf16>
    %cst_16 = arith.constant dense<0.000000e+00> : vector<8x8xf32>
    %45 = tpu.matmul %42, %43, %cst_16 {dimension_numbers = #tpu.dot_dimension_numbers<[1], [1], [0], [0], [0, 0, 1, 0], [], []>} : vector<8x8xbf16>, vector<8x8xbf16>, vector<8x8xf32> -> vector<8x8xf32>
    %cst_17 = arith.constant 0.353553385 : f32
    %46 = vector.broadcast %cst_17 : f32 to vector<8x8xf32>
    %47 = arith.mulf %45, %46 : vector<8x8xf32>
    %cst_18 = arith.constant dense<0xFF800000> : vector<8xf32>
    %48 = vector.multi_reduction <maximumf>, %47, %cst_18 [1] : vector<8x8xf32> to vector<8xf32>
    %49 = vector.shape_cast %48 : vector<8xf32> to vector<8x1xf32>
    %50 = vector.broadcast %49 : vector<8x1xf32> to vector<8x8xf32>
    %51 = arith.subf %47, %50 : vector<8x8xf32>
    %52 = math.exp %51 : vector<8x8xf32>
    %cst_19 = arith.constant dense<0.000000e+00> : vector<8xf32>
    %53 = vector.multi_reduction <add>, %52, %cst_19 [1] : vector<8x8xf32> to vector<8xf32>
    %54 = vector.shape_cast %53 : vector<8xf32> to vector<8x1xf32>
    %55 = arith.truncf %52 : vector<8x8xf32> to vector<8x8xbf16>
    %cst_20 = arith.constant dense<0.000000e+00> : vector<8x8xf32>
    %56 = tpu.matmul %55, %44, %cst_20 {dimension_numbers = #tpu.dot_dimension_numbers<[1], [0], [0], [1], [0, 0, 1, 1], [], []>} : vector<8x8xbf16>, vector<8x8xbf16>, vector<8x8xf32> -> vector<8x8xf32>
    %57 = tpu.reciprocal %54 {approx = true} : vector<8x1xf32> -> vector<8x1xf32>
    %58 = vector.broadcast %57 : vector<8x1xf32> to vector<8x8xf32>
    %59 = arith.mulf %56, %58 : vector<8x8xf32>
    %c0_21 = arith.constant 0 : index
    %c16 = arith.constant 16 : index
    %60 = vector.load %arg6[%c0_21, %c16] : memref<16x32xf32, #tpu.memory_space<vmem>>, vector<8x8xf32>
    tpu.vector_store %arg6[%c0_21, %c16], %59 {strides = array<i32>} : memref<16x32xf32, #tpu.memory_space<vmem>>, vector<8x8xf32>,
    %61 = vector.extract_strided_slice %3 {offsets = [0, 24], sizes = [8, 8], strides = [1, 1]} : vector<16x96xbf16> to vector<8x8xbf16>
    %62 = vector.extract_strided_slice %3 {offsets = [0, 56], sizes = [8, 8], strides = [1, 1]} : vector<16x96xbf16> to vector<8x8xbf16>
    %63 = vector.extract_strided_slice %3 {offsets = [0, 88], sizes = [8, 8], strides = [1, 1]} : vector<16x96xbf16> to vector<8x8xbf16>
    %cst_22 = arith.constant dense<0.000000e+00> : vector<8x8xf32>
    %64 = tpu.matmul %61, %62, %cst_22 {dimension_numbers = #tpu.dot_dimension_numbers<[1], [1], [0], [0], [0, 0, 1, 0], [], []>} : vector<8x8xbf16>, vector<8x8xbf16>, vector<8x8xf32> -> vector<8x8xf32>
    %cst_23 = arith.constant 0.353553385 : f32
    %65 = vector.broadcast %cst_23 : f32 to vector<8x8xf32>
    %66 = arith.mulf %64, %65 : vector<8x8xf32>
    %cst_24 = arith.constant dense<0xFF800000> : vector<8xf32>
    %67 = vector.multi_reduction <maximumf>, %66, %cst_24 [1] : vector<8x8xf32> to vector<8xf32>
    %68 = vector.shape_cast %67 : vector<8xf32> to vector<8x1xf32>
    %69 = vector.broadcast %68 : vector<8x1xf32> to vector<8x8xf32>
    %70 = arith.subf %66, %69 : vector<8x8xf32>
    %71 = math.exp %70 : vector<8x8xf32>
    %cst_25 = arith.constant dense<0.000000e+00> : vector<8xf32>
    %72 = vector.multi_reduction <add>, %71, %cst_25 [1] : vector<8x8xf32> to vector<8xf32>
    %73 = vector.shape_cast %72 : vector<8xf32> to vector<8x1xf32>
    %74 = arith.truncf %71 : vector<8x8xf32> to vector<8x8xbf16>
    %cst_26 = arith.constant dense<0.000000e+00> : vector<8x8xf32>
    %75 = tpu.matmul %74, %63, %cst_26 {dimension_numbers = #tpu.dot_dimension_numbers<[1], [0], [0], [1], [0, 0, 1, 1], [], []>} : vector<8x8xbf16>, vector<8x8xbf16>, vector<8x8xf32> -> vector<8x8xf32>
    %76 = tpu.reciprocal %73 {approx = true} : vector<8x1xf32> -> vector<8x1xf32>
    %77 = vector.broadcast %76 : vector<8x1xf32> to vector<8x8xf32>
    %78 = arith.mulf %75, %77 : vector<8x8xf32>
    %c0_27 = arith.constant 0 : index
    %c24 = arith.constant 24 : index
    %79 = vector.load %arg6[%c0_27, %c24] : memref<16x32xf32, #tpu.memory_space<vmem>>, vector<8x8xf32>
    tpu.vector_store %arg6[%c0_27, %c24], %78 {strides = array<i32>} : memref<16x32xf32, #tpu.memory_space<vmem>>, vector<8x8xf32>,
    %80 = vector.extract_strided_slice %3 {offsets = [8, 0], sizes = [8, 8], strides = [1, 1]} : vector<16x96xbf16> to vector<8x8xbf16>
    %81 = vector.extract_strided_slice %3 {offsets = [8, 32], sizes = [8, 8], strides = [1, 1]} : vector<16x96xbf16> to vector<8x8xbf16>
    %82 = vector.extract_strided_slice %3 {offsets = [8, 64], sizes = [8, 8], strides = [1, 1]} : vector<16x96xbf16> to vector<8x8xbf16>
    %cst_28 = arith.constant dense<0.000000e+00> : vector<8x8xf32>
    %83 = tpu.matmul %80, %81, %cst_28 {dimension_numbers = #tpu.dot_dimension_numbers<[1], [1], [0], [0], [0, 0, 1, 0], [], []>} : vector<8x8xbf16>, vector<8x8xbf16>, vector<8x8xf32> -> vector<8x8xf32>
    %cst_29 = arith.constant 0.353553385 : f32
    %84 = vector.broadcast %cst_29 : f32 to vector<8x8xf32>
    %85 = arith.mulf %83, %84 : vector<8x8xf32>
    %cst_30 = arith.constant dense<0xFF800000> : vector<8xf32>
    %86 = vector.multi_reduction <maximumf>, %85, %cst_30 [1] : vector<8x8xf32> to vector<8xf32>
    %87 = vector.shape_cast %86 : vector<8xf32> to vector<8x1xf32>
    %88 = vector.broadcast %87 : vector<8x1xf32> to vector<8x8xf32>
    %89 = arith.subf %85, %88 : vector<8x8xf32>
    %90 = math.exp %89 : vector<8x8xf32>
    %cst_31 = arith.constant dense<0.000000e+00> : vector<8xf32>
    %91 = vector.multi_reduction <add>, %90, %cst_31 [1] : vector<8x8xf32> to vector<8xf32>
    %92 = vector.shape_cast %91 : vector<8xf32> to vector<8x1xf32>
    %93 = arith.truncf %90 : vector<8x8xf32> to vector<8x8xbf16>
    %cst_32 = arith.constant dense<0.000000e+00> : vector<8x8xf32>
    %94 = tpu.matmul %93, %82, %cst_32 {dimension_numbers = #tpu.dot_dimension_numbers<[1], [0], [0], [1], [0, 0, 1, 1], [], []>} : vector<8x8xbf16>, vector<8x8xbf16>, vector<8x8xf32> -> vector<8x8xf32>
    %95 = tpu.reciprocal %92 {approx = true} : vector<8x1xf32> -> vector<8x1xf32>
    %96 = vector.broadcast %95 : vector<8x1xf32> to vector<8x8xf32>
    %97 = arith.mulf %94, %96 : vector<8x8xf32>
    %c8_33 = arith.constant 8 : index
    %c0_34 = arith.constant 0 : index
    %98 = vector.load %arg6[%c8_33, %c0_34] : memref<16x32xf32, #tpu.memory_space<vmem>>, vector<8x8xf32>
    tpu.vector_store %arg6[%c8_33, %c0_34], %97 {strides = array<i32>} : memref<16x32xf32, #tpu.memory_space<vmem>>, vector<8x8xf32>,
    %99 = vector.extract_strided_slice %3 {offsets = [8, 8], sizes = [8, 8], strides = [1, 1]} : vector<16x96xbf16> to vector<8x8xbf16>
    %100 = vector.extract_strided_slice %3 {offsets = [8, 40], sizes = [8, 8], strides = [1, 1]} : vector<16x96xbf16> to vector<8x8xbf16>
    %101 = vector.extract_strided_slice %3 {offsets = [8, 72], sizes = [8, 8], strides = [1, 1]} : vector<16x96xbf16> to vector<8x8xbf16>
    %cst_35 = arith.constant dense<0.000000e+00> : vector<8x8xf32>
    %102 = tpu.matmul %99, %100, %cst_35 {dimension_numbers = #tpu.dot_dimension_numbers<[1], [1], [0], [0], [0, 0, 1, 0], [], []>} : vector<8x8xbf16>, vector<8x8xbf16>, vector<8x8xf32> -> vector<8x8xf32>
    %cst_36 = arith.constant 0.353553385 : f32
    %103 = vector.broadcast %cst_36 : f32 to vector<8x8xf32>
    %104 = arith.mulf %102, %103 : vector<8x8xf32>
    %cst_37 = arith.constant dense<0xFF800000> : vector<8xf32>
    %105 = vector.multi_reduction <maximumf>, %104, %cst_37 [1] : vector<8x8xf32> to vector<8xf32>
    %106 = vector.shape_cast %105 : vector<8xf32> to vector<8x1xf32>
    %107 = vector.broadcast %106 : vector<8x1xf32> to vector<8x8xf32>
    %108 = arith.subf %104, %107 : vector<8x8xf32>
    %109 = math.exp %108 : vector<8x8xf32>
    %cst_38 = arith.constant dense<0.000000e+00> : vector<8xf32>
    %110 = vector.multi_reduction <add>, %109, %cst_38 [1] : vector<8x8xf32> to vector<8xf32>
    %111 = vector.shape_cast %110 : vector<8xf32> to vector<8x1xf32>
    %112 = arith.truncf %109 : vector<8x8xf32> to vector<8x8xbf16>
    %cst_39 = arith.constant dense<0.000000e+00> : vector<8x8xf32>
    %113 = tpu.matmul %112, %101, %cst_39 {dimension_numbers = #tpu.dot_dimension_numbers<[1], [0], [0], [1], [0, 0, 1, 1], [], []>} : vector<8x8xbf16>, vector<8x8xbf16>, vector<8x8xf32> -> vector<8x8xf32>
    %114 = tpu.reciprocal %111 {approx = true} : vector<8x1xf32> -> vector<8x1xf32>
    %115 = vector.broadcast %114 : vector<8x1xf32> to vector<8x8xf32>
    %116 = arith.mulf %113, %115 : vector<8x8xf32>
    %c8_40 = arith.constant 8 : index
    %c8_41 = arith.constant 8 : index
    %117 = vector.load %arg6[%c8_40, %c8_41] : memref<16x32xf32, #tpu.memory_space<vmem>>, vector<8x8xf32>
    tpu.vector_store %arg6[%c8_40, %c8_41], %116 {strides = array<i32>} : memref<16x32xf32, #tpu.memory_space<vmem>>, vector<8x8xf32>,
    %118 = vector.extract_strided_slice %3 {offsets = [8, 16], sizes = [8, 8], strides = [1, 1]} : vector<16x96xbf16> to vector<8x8xbf16>
    %119 = vector.extract_strided_slice %3 {offsets = [8, 48], sizes = [8, 8], strides = [1, 1]} : vector<16x96xbf16> to vector<8x8xbf16>
    %120 = vector.extract_strided_slice %3 {offsets = [8, 80], sizes = [8, 8], strides = [1, 1]} : vector<16x96xbf16> to vector<8x8xbf16>
    %cst_42 = arith.constant dense<0.000000e+00> : vector<8x8xf32>
    %121 = tpu.matmul %118, %119, %cst_42 {dimension_numbers = #tpu.dot_dimension_numbers<[1], [1], [0], [0], [0, 0, 1, 0], [], []>} : vector<8x8xbf16>, vector<8x8xbf16>, vector<8x8xf32> -> vector<8x8xf32>
    %cst_43 = arith.constant 0.353553385 : f32
    %122 = vector.broadcast %cst_43 : f32 to vector<8x8xf32>
    %123 = arith.mulf %121, %122 : vector<8x8xf32>
    %cst_44 = arith.constant dense<0xFF800000> : vector<8xf32>
    %124 = vector.multi_reduction <maximumf>, %123, %cst_44 [1] : vector<8x8xf32> to vector<8xf32>
    %125 = vector.shape_cast %124 : vector<8xf32> to vector<8x1xf32>
    %126 = vector.broadcast %125 : vector<8x1xf32> to vector<8x8xf32>
    %127 = arith.subf %123, %126 : vector<8x8xf32>
    %128 = math.exp %127 : vector<8x8xf32>
    %cst_45 = arith.constant dense<0.000000e+00> : vector<8xf32>
    %129 = vector.multi_reduction <add>, %128, %cst_45 [1] : vector<8x8xf32> to vector<8xf32>
    %130 = vector.shape_cast %129 : vector<8xf32> to vector<8x1xf32>
    %131 = arith.truncf %128 : vector<8x8xf32> to vector<8x8xbf16>
    %cst_46 = arith.constant dense<0.000000e+00> : vector<8x8xf32>
    %132 = tpu.matmul %131, %120, %cst_46 {dimension_numbers = #tpu.dot_dimension_numbers<[1], [0], [0], [1], [0, 0, 1, 1], [], []>} : vector<8x8xbf16>, vector<8x8xbf16>, vector<8x8xf32> -> vector<8x8xf32>
    %133 = tpu.reciprocal %130 {approx = true} : vector<8x1xf32> -> vector<8x1xf32>
    %134 = vector.broadcast %133 : vector<8x1xf32> to vector<8x8xf32>
    %135 = arith.mulf %132, %134 : vector<8x8xf32>
    %c8_47 = arith.constant 8 : index
    %c16_48 = arith.constant 16 : index
    %136 = vector.load %arg6[%c8_47, %c16_48] : memref<16x32xf32, #tpu.memory_space<vmem>>, vector<8x8xf32>
    tpu.vector_store %arg6[%c8_47, %c16_48], %135 {strides = array<i32>} : memref<16x32xf32, #tpu.memory_space<vmem>>, vector<8x8xf32>,
    %137 = vector.extract_strided_slice %3 {offsets = [8, 24], sizes = [8, 8], strides = [1, 1]} : vector<16x96xbf16> to vector<8x8xbf16>
    %138 = vector.extract_strided_slice %3 {offsets = [8, 56], sizes = [8, 8], strides = [1, 1]} : vector<16x96xbf16> to vector<8x8xbf16>
    %139 = vector.extract_strided_slice %3 {offsets = [8, 88], sizes = [8, 8], strides = [1, 1]} : vector<16x96xbf16> to vector<8x8xbf16>
    %cst_49 = arith.constant dense<0.000000e+00> : vector<8x8xf32>
    %140 = tpu.matmul %137, %138, %cst_49 {dimension_numbers = #tpu.dot_dimension_numbers<[1], [1], [0], [0], [0, 0, 1, 0], [], []>} : vector<8x8xbf16>, vector<8x8xbf16>, vector<8x8xf32> -> vector<8x8xf32>
    %cst_50 = arith.constant 0.353553385 : f32
    %141 = vector.broadcast %cst_50 : f32 to vector<8x8xf32>
    %142 = arith.mulf %140, %141 : vector<8x8xf32>
    %cst_51 = arith.constant dense<0xFF800000> : vector<8xf32>
    %143 = vector.multi_reduction <maximumf>, %142, %cst_51 [1] : vector<8x8xf32> to vector<8xf32>
    %144 = vector.shape_cast %143 : vector<8xf32> to vector<8x1xf32>
    %145 = vector.broadcast %144 : vector<8x1xf32> to vector<8x8xf32>
    %146 = arith.subf %142, %145 : vector<8x8xf32>
    %147 = math.exp %146 : vector<8x8xf32>
    %cst_52 = arith.constant dense<0.000000e+00> : vector<8xf32>
    %148 = vector.multi_reduction <add>, %147, %cst_52 [1] : vector<8x8xf32> to vector<8xf32>
    %149 = vector.shape_cast %148 : vector<8xf32> to vector<8x1xf32>
    %150 = arith.truncf %147 : vector<8x8xf32> to vector<8x8xbf16>
    %cst_53 = arith.constant dense<0.000000e+00> : vector<8x8xf32>
    %151 = tpu.matmul %150, %139, %cst_53 {dimension_numbers = #tpu.dot_dimension_numbers<[1], [0], [0], [1], [0, 0, 1, 1], [], []>} : vector<8x8xbf16>, vector<8x8xbf16>, vector<8x8xf32> -> vector<8x8xf32>
    %152 = tpu.reciprocal %149 {approx = true} : vector<8x1xf32> -> vector<8x1xf32>
    %153 = vector.broadcast %152 : vector<8x1xf32> to vector<8x8xf32>
    %154 = arith.mulf %151, %153 : vector<8x8xf32>
    %c8_54 = arith.constant 8 : index
    %c24_55 = arith.constant 24 : index
    %155 = vector.load %arg6[%c8_54, %c24_55] : memref<16x32xf32, #tpu.memory_space<vmem>>, vector<8x8xf32>
    tpu.vector_store %arg6[%c8_54, %c24_55], %154 {strides = array<i32>} : memref<16x32xf32, #tpu.memory_space<vmem>>, vector<8x8xf32>,
    %c0_56 = arith.constant 0 : index
    %c0_57 = arith.constant 0 : index
    %156 = vector.load %arg6[%c0_56, %c0_57] : memref<16x32xf32, #tpu.memory_space<vmem>>, vector<16x32xf32>
    %157 = arith.truncf %156 : vector<16x32xf32> to vector<16x32xbf16>
    %c0_58 = arith.constant 0 : index
    %c0_59 = arith.constant 0 : index
    %158 = vector.load %arg3[%c0_58, %c0_59] : memref<32x32xbf16, #tpu.memory_space<vmem>>, vector<32x32xbf16>
    %cst_60 = arith.constant dense<0.000000e+00> : vector<16x32xf32>
    %159 = tpu.matmul %157, %158, %cst_60 {dimension_numbers = #tpu.dot_dimension_numbers<[1], [0], [0], [1], [0, 0, 1, 1], [], []>} : vector<16x32xbf16>, vector<32x32xbf16>, vector<16x32xf32> -> vector<16x32xf32>
    %c0_61 = arith.constant 0 : index
    %c0_62 = arith.constant 0 : index
    %160 = vector.load %arg4[%c0_61, %c0_62] : memref<1x32xf32, #tpu.memory_space<vmem>>, vector<1x32xf32>
    %161 = vector.broadcast %160 : vector<1x32xf32> to vector<16x32xf32>
    %162 = arith.addf %159, %161 : vector<16x32xf32>
    %c0_63 = arith.constant 0 : index
    %c0_64 = arith.constant 0 : index
    %163 = vector.load %arg5[%c0_63, %c0_64] : memref<16x32xf32, #tpu.memory_space<vmem>>, vector<16x32xf32>
    tpu.vector_store %arg5[%c0_63, %c0_64], %162 {strides = array<i32>} : memref<16x32xf32, #tpu.memory_space<vmem>>, vector<16x32xf32>,
    return
  }
  func.func @transform_0(%arg0: i32) -> (i32, i32) {
    %c0_i32 = arith.constant 0 : i32
    %c0_i32_0 = arith.constant 0 : i32
    return %arg0, %c0_i32 : i32, i32
  }
  func.func @transform_1(%arg0: i32) -> (i32, i32) {
    %c0_i32 = arith.constant 0 : i32
    %c0_i32_0 = arith.constant 0 : i32
    %c0_i32_1 = arith.constant 0 : i32
    return %c0_i32, %c0_i32_0 : i32, i32
  }
  func.func @transform_2(%arg0: i32) -> (i32, i32) {
    %c0_i32 = arith.constant 0 : i32
    %c0_i32_0 = arith.constant 0 : i32
    %c0_i32_1 = arith.constant 0 : i32
    return %c0_i32, %c0_i32_0 : i32, i32
  }
  func.func @transform_3(%arg0: i32) -> (i32, i32) {
    %c0_i32 = arith.constant 0 : i32
    %c0_i32_0 = arith.constant 0 : i32
    %c0_i32_1 = arith.constant 0 : i32
    return %c0_i32, %c0_i32_0 : i32, i32
  }
  func.func @transform_4(%arg0: i32) -> (i32, i32) {
    %c0_i32 = arith.constant 0 : i32
    %c0_i32_0 = arith.constant 0 : i32
    return %arg0, %c0_i32 : i32, i32
  }
}

</mosaic_0001>

<llo_original>
// kernel: tpu_custom_call.1
$region0: #{tpu_custom_call.1}
  #allocation0 [shape = 'u32[]', space=smem, size = 0x4, offset = 0x4, fixed_abs, tag = 'smem constant byte address 0x4 - core index']
  #allocation1 [shape = 'u32[144,128]{1,0:T(1,128)}', space=vmem, size = 0x12000, scoped, tag = 'internal scratch']
  #allocation2 [shape = 'f32[16,32]{1,0:T(8,128)}', space=vmem, size = 0x2000, scoped, tag = 'scratch operand']
  %s0 = inlined_call_operand.hbm [shape: bf16[16,32], index: 0, kind: input, shape index: {}]
  %s1 = inlined_call_operand.hbm [shape: bf16[32,96], index: 1, kind: input, shape index: {}]
  %s2 = inlined_call_operand.hbm [shape: bf16[32,32], index: 2, kind: input, shape index: {}]
  %s3 = inlined_call_operand.vmem [shape: f32[1,32], index: 3, kind: input, shape index: {}]
  %s4 = inlined_call_operand.hbm [shape: f32[16,32], index: 4, kind: output, shape index: {}]
  %s5 = sld [smem:[#allocation0]]
  $region38: #{tpu_custom_call.1} parent=0
    _
  %s7 = ssub.s32 1, %s5
  %s8 = scalar_select 0, %s7, %s5
  $region1: #{tpu_custom_call.1} parent=0
    #allocation3 [shape = 'u8[4096]{0}', space=vmem, size = 0x1000, scoped, tag = 'input window, operand 0, single buffered']
    #allocation4 [shape = 's32[1]{0}', space=sflag, size = 0x4, scoped, tag = 'scoped memory for tpu_custom_call.1']
    #allocation5 [shape = 's32[1]{0}', space=sflag, size = 0x4, scoped, tag = 'scoped memory for tpu_custom_call.1']
    #allocation6 [shape = 'u8[8192]{0}', space=vmem, size = 0x2000, scoped, tag = 'input window, operand 1, single buffered']
    #allocation7 [shape = 's32[1]{0}', space=sflag, size = 0x4, scoped, tag = 'scoped memory for tpu_custom_call.1']
    #allocation8 [shape = 'u8[8192]{0}', space=vmem, size = 0x2000, scoped, tag = 'input window, operand 2, single buffered']
    #allocation9 [shape = 'u8[8192]{0}', space=vmem, size = 0x2000, scoped, tag = 'output window, operand 0, single buffered']
    %9 = vsyncpa [#allocation4], 0
    %10 = vsyncpa [#allocation7], 0
    %11 = vsyncpa [#allocation5], 0
    // Predicated region
    $region2: #{tpu_custom_call.1} parent=1 // pred_check
      _
    $region3: #{tpu_custom_call.1} parent=1 // pred_check_branch
      %13 = sbr.rel (0) target = $region5
    $region4: #{tpu_custom_call.1} parent=1 // pred_region
      %s15 = ssub.s32 128, 128
      %16 = vsyncadd [#allocation4], %s15
      %s17 = sshll.u32 [#allocation3], 4
      %s18 = int_to_ptr.vmem [resolvable:$true] %s17
      %23 = dma.hbm_to_vmem [thread:$0]  %s0, 128, %s18, [#allocation4], 64, 64, 4
    $region5: #{tpu_custom_call.1} parent=1 // pred_fallthru
      _
    // Predicated region
    $region6: #{tpu_custom_call.1} parent=1 // pred_check
      _
    $region7: #{tpu_custom_call.1} parent=1 // pred_check_branch
      %25 = sbr.rel (0) target = $region9
    $region8: #{tpu_custom_call.1} parent=1 // pred_region
      %s27 = ssub.s32 256, 256
      %28 = vsyncadd [#allocation7], %s27
      %s29 = sshll.u32 [#allocation6], 4
      %s30 = int_to_ptr.vmem [resolvable:$true] %s29
      %35 = dma.hbm_to_vmem [thread:$0]  %s1, 256, %s30, [#allocation7], 64, 64, 4
    $region9: #{tpu_custom_call.1} parent=1 // pred_fallthru
      _
    // Predicated region
    $region10: #{tpu_custom_call.1} parent=1 // pred_check
      _
    $region11: #{tpu_custom_call.1} parent=1 // pred_check_branch
      %37 = sbr.rel (0) target = $region13
    $region12: #{tpu_custom_call.1} parent=1 // pred_region
      %s39 = ssub.s32 256, 256
      %40 = vsyncadd [#allocation7], %s39
      %s41 = sshll.u32 [#allocation8], 4
      %s42 = int_to_ptr.vmem [resolvable:$true] %s41
      %47 = dma.hbm_to_vmem [thread:$0]  %s2, 256, %s42, [#allocation7], 64, 64, 4
    $region13: #{tpu_custom_call.1} parent=1 // pred_fallthru
      _
    // Predicated region
    $region14: #{tpu_custom_call.1} parent=1 // pred_check
      _
    $region15: #{tpu_custom_call.1} parent=1 // pred_check_branch
      %49 = sbr.rel (0) target = $region17
    $region16: #{tpu_custom_call.1} parent=1 // pred_region
      _
    $region17: #{tpu_custom_call.1} parent=1 // pred_fallthru
      _
    // Predicated region
    $region18: #{tpu_custom_call.1} parent=1 // pred_check
      _
    $region19: #{tpu_custom_call.1} parent=1 // pred_check_branch
      %51 = sbr.rel (0) target = $region21
    $region20: #{tpu_custom_call.1} parent=1 // pred_region
      %52 = dma.done [#allocation4], 128
    $region21: #{tpu_custom_call.1} parent=1 // pred_fallthru
      _
    // Predicated region
    $region22: #{tpu_custom_call.1} parent=1 // pred_check
      _
    $region23: #{tpu_custom_call.1} parent=1 // pred_check_branch
      %54 = sbr.rel (0) target = $region25
    $region24: #{tpu_custom_call.1} parent=1 // pred_region
      %55 = dma.done [#allocation7], 256
    $region25: #{tpu_custom_call.1} parent=1 // pred_fallthru
      _
    // Predicated region
    $region26: #{tpu_custom_call.1} parent=1 // pred_check
      _
    $region27: #{tpu_custom_call.1} parent=1 // pred_check_branch
      %57 = sbr.rel (0) target = $region29
    $region28: #{tpu_custom_call.1} parent=1 // pred_region
      %58 = dma.done [#allocation7], 256
    $region29: #{tpu_custom_call.1} parent=1 // pred_fallthru
      _
    %v60 = vld [vmem:[#allocation3] sm:$0xf]
    %v61 = vld [vmem:[#allocation3 + $0x4] sm:$0xf]
    %v62 = vld [vmem:[#allocation6] sm:$0xf]
    %v63 = vld [vmem:[#allocation6 + $0x4] sm:$0xf]
    %v64 = vld [vmem:[#allocation6 + $0x8] sm:$0xf]
    %v65 = vld [vmem:[#allocation6 + $0xc] sm:$0xf]
    %v68 = vunpack.c.l.b16 %v60
    %v69 = vunpack.c.l.b16 %v61
    %v70 = vpack.c.b16 %v69, %v68
    %v75 = vunpack.c.l.b16 %v62
    %v76 = vunpack.c.l.b16 %v63
    %v77 = vunpack.c.l.b16 %v64
    %v78 = vunpack.c.l.b16 %v65
    %v79 = vpack.c.b16 %v76, %v75
    %v80 = vpack.c.b16 %v78, %v77
    %vm83 = vcmask 261120
    %v85 = vsel %vm83, %v70, 0
    %87 = vmatprep.subr.bf16.mxu0 0
    %88 = vmatpush1.bf16.msra.mxu0 %v79
    %89 = vmatprep.subr.bf16.mxu0 0
    %90 = vmatpush1.bf16.msra.mxu0 %v80
    %91 = vmatprep.subr.bf16.mxu0 0
    %92 = vmatpush1.bf16.msra.mxu0 0
    %93 = vmatprep.subr.bf16.mxu0 0
    %94 = vmatpush1.bf16.msra.mxu0 0
    %95 = vmatprep.subr.bf16.mxu0 0
    %96 = vmatpush1.bf16.msra.mxu0 0
    %97 = vmatprep.subr.bf16.mxu0 0
    %98 = vmatpush1.bf16.msra.mxu0 0
    %99 = vmatprep.subr.bf16.mxu0 0
    %100 = vmatpush1.bf16.msra.mxu0 0
    %101 = vmatprep.subr.bf16.mxu0 0
    %102 = vmatpush1.bf16.msra.mxu0 0
    %103 = vmatprep.subr.bf16.mxu0 0
    %104 = vmatpush1.bf16.msra.mxu0 0
    %105 = vmatprep.subr.bf16.mxu0 0
    %106 = vmatpush1.bf16.msra.mxu0 0
    %107 = vmatprep.subr.bf16.mxu0 0
    %108 = vmatpush1.bf16.msra.mxu0 0
    %109 = vmatprep.subr.bf16.mxu0 0
    %110 = vmatpush1.bf16.msra.mxu0 0
    %111 = vmatprep.subr.bf16.mxu0 0
    %112 = vmatpush1.bf16.msra.mxu0 0
    %113 = vmatprep.subr.bf16.mxu0 0
    %114 = vmatpush1.bf16.msra.mxu0 0
    %115 = vmatprep.subr.bf16.mxu0 0
    %116 = vmatpush1.bf16.msra.mxu0 0
    %117 = vmatprep.subr.bf16.mxu0 0
    %118 = vmatpush1.bf16.msra.mxu0 0
    %119 = vmatprep.mubr.bf16.mxu0 0
    %120 = vmatmul.mubr.bf16.gmra.mrb[0].mxu0 %v85
    %v121 = vpop.f32.mrb[0].mxu0
    %v122 = vadd.f32 0.0, %v121
    %v123 = vpop.f32.mrb[0].mxu0
    %v124 = vpop.f32.mrb[0].mxu0
    %v125 = vadd.f32 0.0, %v124
    %v126 = vpop.f32.mrb[0].mxu0
    %127 = vdwg.mxu0
    %v128 = vpack.c.bf16 %v125, %v122
    %130 = vrot.lane.b32.xlu0 %v128, 96
    %v131 = vpop.permute.xlu0 %130
    %vm132 = vcmask 64512
    %v134 = vsel %vm132, %v128, 0
    %v137 = vsel %vm132, %v131, 0
    %139 = vmatprep.subr.bf16.mxu0 0
    %140 = vmatpush1.bf16.xpose.msra.mxu0 %v137
    %141 = vmatprep.subr.bf16.mxu0 0
    %142 = vmatpush1.bf16.xpose.msra.mxu0 0
    %143 = vmatprep.subr.bf16.mxu0 0
    %144 = vmatpush1.bf16.xpose.msra.mxu0 0
    %145 = vmatprep.subr.bf16.mxu0 0
    %146 = vmatpush1.bf16.xpose.msra.mxu0 0
    %147 = vmatprep.subr.bf16.mxu0 0
    %148 = vmatpush1.bf16.xpose.msra.mxu0 0
    %149 = vmatprep.subr.bf16.mxu0 0
    %150 = vmatpush1.bf16.xpose.msra.mxu0 0
    %151 = vmatprep.subr.bf16.mxu0 0
    %152 = vmatpush1.bf16.xpose.msra.mxu0 0
    %153 = vmatprep.subr.bf16.mxu0 0
    %154 = vmatpush1.bf16.xpose.msra.mxu0 0
    %155 = vmatprep.subr.bf16.mxu0 0
    %156 = vmatpush1.bf16.xpose.msra.mxu0 0
    %157 = vmatprep.subr.bf16.mxu0 0
    %158 = vmatpush1.bf16.xpose.msra.mxu0 0
    %159 = vmatprep.subr.bf16.mxu0 0
    %160 = vmatpush1.bf16.xpose.msra.mxu0 0
    %161 = vmatprep.subr.bf16.mxu0 0
    %162 = vmatpush1.bf16.xpose.msra.mxu0 0
    %163 = vmatprep.subr.bf16.mxu0 0
    %164 = vmatpush1.bf16.xpose.msra.mxu0 0
    %165 = vmatprep.subr.bf16.mxu0 0
    %166 = vmatpush1.bf16.xpose.msra.mxu0 0
    %167 = vmatprep.subr.bf16.mxu0 0
    %168 = vmatpush1.bf16.xpose.msra.mxu0 0
    %169 = vmatprep.subr.bf16.mxu0 0
    %170 = vmatpush1.bf16.xpose.msra.mxu0 0
    %171 = vmatprep.mubr.bf16.mxu0 0
    %172 = vmatmul.mubr.bf16.gmra.mrb[0].mxu0 %v134
    %v173 = vpop.f32.mrb[0].mxu0
    %v174 = vadd.f32 0.0, %v173
    %v175 = vpop.f32.mrb[0].mxu0
    %v176 = vpop.f32.mrb[0].mxu0
    %v177 = vpop.f32.mrb[0].mxu0
    %178 = vdwg.mxu0
    %v179 = vmul.f32 %v174, 0.35355338
    %v180 = vsel %vm132, %v179, -inf
    %181 = vmax.xlane.f32.xlu0 %v180
    %v182 = vpop.xlane.xlu0 %181
    %v183 = vsub.f32 %v179, %v182
    %v184 = vmul.f32 %v183, 1.442695
    %v185 = vpow.pop %v184
    %v186 = vsel %vm132, %v185, 0.0
    %187 = vadd.xlane.f32.xlu0 %v186
    %v188 = vpop.xlane.xlu0 %187
    %v189 = vpack.c.bf16 %v185, %v185
    %190 = vrot.lane.b32.xlu0 %v128, 64
    %v191 = vpop.permute.xlu0 %190
    %v193 = vsel %vm132, %v189, 0
    %vm195 = vcmask 1043456
    %v197 = vsel %vm195, %v191, 0
    %199 = vmatprep.subr.bf16.mxu0 0
    %200 = vmatpush1.bf16.msra.mxu0 %v197
    %201 = vmatprep.subr.bf16.mxu0 0
    %202 = vmatpush1.bf16.msra.mxu0 0
    %203 = vmatprep.subr.bf16.mxu0 0
    %204 = vmatpush1.bf16.msra.mxu0 0
    %205 = vmatprep.subr.bf16.mxu0 0
    %206 = vmatpush1.bf16.msra.mxu0 0
    %207 = vmatprep.subr.bf16.mxu0 0
    %208 = vmatpush1.bf16.msra.mxu0 0
    %209 = vmatprep.subr.bf16.mxu0 0
    %210 = vmatpush1.bf16.msra.mxu0 0
    %211 = vmatprep.subr.bf16.mxu0 0
    %212 = vmatpush1.bf16.msra.mxu0 0
    %213 = vmatprep.subr.bf16.mxu0 0
    %214 = vmatpush1.bf16.msra.mxu0 0
    %215 = vmatprep.subr.bf16.mxu0 0
    %216 = vmatpush1.bf16.msra.mxu0 0
    %217 = vmatprep.subr.bf16.mxu0 0
    %218 = vmatpush1.bf16.msra.mxu0 0
    %219 = vmatprep.subr.bf16.mxu0 0
    %220 = vmatpush1.bf16.msra.mxu0 0
    %221 = vmatprep.subr.bf16.mxu0 0
    %222 = vmatpush1.bf16.msra.mxu0 0
    %223 = vmatprep.subr.bf16.mxu0 0
    %224 = vmatpush1.bf16.msra.mxu0 0
    %225 = vmatprep.subr.bf16.mxu0 0
    %226 = vmatpush1.bf16.msra.mxu0 0
    %227 = vmatprep.subr.bf16.mxu0 0
    %228 = vmatpush1.bf16.msra.mxu0 0
    %229 = vmatprep.subr.bf16.mxu0 0
    %230 = vmatpush1.bf16.msra.mxu0 0
    %231 = vmatprep.mubr.bf16.mxu0 0
    %232 = vmatmul.mubr.bf16.gmra.mrb[0].mxu0 %v193
    %v233 = vpop.f32.mrb[0].mxu0
    %v234 = vadd.f32 0.0, %v233
    %v235 = vpop.f32.mrb[0].mxu0
    %v236 = vpop.f32.mrb[0].mxu0
    %v237 = vpop.f32.mrb[0].mxu0
    %238 = vdwg.mxu0
    %v239 = vrcp.pop %v188
    %v240 = vmul.f32 %v234, %v239
    %241 = vst.msk [vmem:[#allocation2] sm:$0xff] %vm132, %v240
    %242 = vrot.lane.b32.xlu0 %v128, 120
    %v243 = vpop.permute.xlu0 %242
    %244 = vrot.lane.b32.xlu0 %v128, 88
    %v245 = vpop.permute.xlu0 %244
    %v247 = vsel %vm132, %v243, 0
    %v250 = vsel %vm132, %v245, 0
    %252 = vmatprep.subr.bf16.mxu0 0
    %253 = vmatpush1.bf16.xpose.msra.mxu0 %v250
    %254 = vmatprep.subr.bf16.mxu0 0
    %255 = vmatpush1.bf16.xpose.msra.mxu0 0
    %256 = vmatprep.subr.bf16.mxu0 0
    %257 = vmatpush1.bf16.xpose.msra.mxu0 0
    %258 = vmatprep.subr.bf16.mxu0 0
    %259 = vmatpush1.bf16.xpose.msra.mxu0 0
    %260 = vmatprep.subr.bf16.mxu0 0
    %261 = vmatpush1.bf16.xpose.msra.mxu0 0
    %262 = vmatprep.subr.bf16.mxu0 0
    %263 = vmatpush1.bf16.xpose.msra.mxu0 0
    %264 = vmatprep.subr.bf16.mxu0 0
    %265 = vmatpush1.bf16.xpose.msra.mxu0 0
    %266 = vmatprep.subr.bf16.mxu0 0
    %267 = vmatpush1.bf16.xpose.msra.mxu0 0
    %268 = vmatprep.subr.bf16.mxu0 0
    %269 = vmatpush1.bf16.xpose.msra.mxu0 0
    %270 = vmatprep.subr.bf16.mxu0 0
    %271 = vmatpush1.bf16.xpose.msra.mxu0 0
    %272 = vmatprep.subr.bf16.mxu0 0
    %273 = vmatpush1.bf16.xpose.msra.mxu0 0
    %274 = vmatprep.subr.bf16.mxu0 0
    %275 = vmatpush1.bf16.xpose.msra.mxu0 0
    %276 = vmatprep.subr.bf16.mxu0 0
    %277 = vmatpush1.bf16.xpose.msra.mxu0 0
    %278 = vmatprep.subr.bf16.mxu0 0
    %279 = vmatpush1.bf16.xpose.msra.mxu0 0
    %280 = vmatprep.subr.bf16.mxu0 0
    %281 = vmatpush1.bf16.xpose.msra.mxu0 0
    %282 = vmatprep.subr.bf16.mxu0 0
    %283 = vmatpush1.bf16.xpose.msra.mxu0 0
    %284 = vmatprep.mubr.bf16.mxu0 0
    %285 = vmatmul.mubr.bf16.gmra.mrb[0].mxu0 %v247
    %v286 = vpop.f32.mrb[0].mxu0
    %v287 = vadd.f32 0.0, %v286
    %v288 = vpop.f32.mrb[0].mxu0
    %v289 = vpop.f32.mrb[0].mxu0
    %v290 = vpop.f32.mrb[0].mxu0
    %291 = vdwg.mxu0
    %v292 = vmul.f32 %v287, 0.35355338
    %v293 = vsel %vm132, %v292, -inf
    %294 = vmax.xlane.f32.xlu0 %v293
    %v295 = vpop.xlane.xlu0 %294
    %v296 = vsub.f32 %v292, %v295
    %v297 = vmul.f32 %v296, 1.442695
    %v298 = vpow.pop %v297
    %v299 = vsel %vm132, %v298, 0.0
    %300 = vadd.xlane.f32.xlu0 %v299
    %v301 = vpop.xlane.xlu0 %300
    %v302 = vpack.c.bf16 %v298, %v298
    %303 = vrot.lane.b32.xlu0 %v128, 56
    %v304 = vpop.permute.xlu0 %303
    %v306 = vsel %vm132, %v302, 0
    %v309 = vsel %vm195, %v304, 0
    %311 = vmatprep.subr.bf16.mxu0 0
    %312 = vmatpush1.bf16.msra.mxu0 %v309
    %313 = vmatprep.subr.bf16.mxu0 0
    %314 = vmatpush1.bf16.msra.mxu0 0
    %315 = vmatprep.subr.bf16.mxu0 0
    %316 = vmatpush1.bf16.msra.mxu0 0
    %317 = vmatprep.subr.bf16.mxu0 0
    %318 = vmatpush1.bf16.msra.mxu0 0
    %319 = vmatprep.subr.bf16.mxu0 0
    %320 = vmatpush1.bf16.msra.mxu0 0
    %321 = vmatprep.subr.bf16.mxu0 0
    %322 = vmatpush1.bf16.msra.mxu0 0
    %323 = vmatprep.subr.bf16.mxu0 0
    %324 = vmatpush1.bf16.msra.mxu0 0
    %325 = vmatprep.subr.bf16.mxu0 0
    %326 = vmatpush1.bf16.msra.mxu0 0
    %327 = vmatprep.subr.bf16.mxu0 0
    %328 = vmatpush1.bf16.msra.mxu0 0
    %329 = vmatprep.subr.bf16.mxu0 0
    %330 = vmatpush1.bf16.msra.mxu0 0
    %331 = vmatprep.subr.bf16.mxu0 0
    %332 = vmatpush1.bf16.msra.mxu0 0
    %333 = vmatprep.subr.bf16.mxu0 0
    %334 = vmatpush1.bf16.msra.mxu0 0
    %335 = vmatprep.subr.bf16.mxu0 0
    %336 = vmatpush1.bf16.msra.mxu0 0
    %337 = vmatprep.subr.bf16.mxu0 0
    %338 = vmatpush1.bf16.msra.mxu0 0
    %339 = vmatprep.subr.bf16.mxu0 0
    %340 = vmatpush1.bf16.msra.mxu0 0
    %341 = vmatprep.subr.bf16.mxu0 0
    %342 = vmatpush1.bf16.msra.mxu0 0
    %343 = vmatprep.mubr.bf16.mxu0 0
    %344 = vmatmul.mubr.bf16.gmra.mrb[0].mxu0 %v306
    %v345 = vpop.f32.mrb[0].mxu0
    %v346 = vadd.f32 0.0, %v345
    %v347 = vpop.f32.mrb[0].mxu0
    %v348 = vpop.f32.mrb[0].mxu0
    %v349 = vpop.f32.mrb[0].mxu0
    %350 = vdwg.mxu0
    %v351 = vrcp.pop %v301
    %v352 = vmul.f32 %v346, %v351
    %354 = vrot.lane.b32.xlu0 %v352, 8
    %v355 = vpop.permute.xlu0 %354
    %vm357 = vcmask 130112
    %358 = vst.msk [vmem:[#allocation2] sm:$0xff] %vm357, %v355
    %359 = vrot.lane.b32.xlu0 %v128, 112
    %v360 = vpop.permute.xlu0 %359
    %361 = vrot.lane.b32.xlu0 %v128, 80
    %v362 = vpop.permute.xlu0 %361
    %v364 = vsel %vm132, %v360, 0
    %v367 = vsel %vm132, %v362, 0
    %369 = vmatprep.subr.bf16.mxu0 0
    %370 = vmatpush1.bf16.xpose.msra.mxu0 %v367
    %371 = vmatprep.subr.bf16.mxu0 0
    %372 = vmatpush1.bf16.xpose.msra.mxu0 0
    %373 = vmatprep.subr.bf16.mxu0 0
    %374 = vmatpush1.bf16.xpose.msra.mxu0 0
    %375 = vmatprep.subr.bf16.mxu0 0
    %376 = vmatpush1.bf16.xpose.msra.mxu0 0
    %377 = vmatprep.subr.bf16.mxu0 0
    %378 = vmatpush1.bf16.xpose.msra.mxu0 0
    %379 = vmatprep.subr.bf16.mxu0 0
    %380 = vmatpush1.bf16.xpose.msra.mxu0 0
    %381 = vmatprep.subr.bf16.mxu0 0
    %382 = vmatpush1.bf16.xpose.msra.mxu0 0
    %383 = vmatprep.subr.bf16.mxu0 0
    %384 = vmatpush1.bf16.xpose.msra.mxu0 0
    %385 = vmatprep.subr.bf16.mxu0 0
    %386 = vmatpush1.bf16.xpose.msra.mxu0 0
    %387 = vmatprep.subr.bf16.mxu0 0
    %388 = vmatpush1.bf16.xpose.msra.mxu0 0
    %389 = vmatprep.subr.bf16.mxu0 0
    %390 = vmatpush1.bf16.xpose.msra.mxu0 0
    %391 = vmatprep.subr.bf16.mxu0 0
    %392 = vmatpush1.bf16.xpose.msra.mxu0 0
    %393 = vmatprep.subr.bf16.mxu0 0
    %394 = vmatpush1.bf16.xpose.msra.mxu0 0
    %395 = vmatprep.subr.bf16.mxu0 0
    %396 = vmatpush1.bf16.xpose.msra.mxu0 0
    %397 = vmatprep.subr.bf16.mxu0 0
    %398 = vmatpush1.bf16.xpose.msra.mxu0 0
    %399 = vmatprep.subr.bf16.mxu0 0
    %400 = vmatpush1.bf16.xpose.msra.mxu0 0
    %401 = vmatprep.mubr.bf16.mxu0 0
    %402 = vmatmul.mubr.bf16.gmra.mrb[0].mxu0 %v364
    %v403 = vpop.f32.mrb[0].mxu0
    %v404 = vadd.f32 0.0, %v403
    %v405 = vpop.f32.mrb[0].mxu0
    %v406 = vpop.f32.mrb[0].mxu0
    %v407 = vpop.f32.mrb[0].mxu0
    %408 = vdwg.mxu0
    %v409 = vmul.f32 %v404, 0.35355338
    %v410 = vsel %vm132, %v409, -inf
    %411 = vmax.xlane.f32.xlu0 %v410
    %v412 = vpop.xlane.xlu0 %411
    %v413 = vsub.f32 %v409, %v412
    %v414 = vmul.f32 %v413, 1.442695
    %v415 = vpow.pop %v414
    %v416 = vsel %vm132, %v415, 0.0
    %417 = vadd.xlane.f32.xlu0 %v416
    %v418 = vpop.xlane.xlu0 %417
    %v419 = vpack.c.bf16 %v415, %v415
    %420 = vrot.lane.b32.xlu0 %v128, 48
    %v421 = vpop.permute.xlu0 %420
    %v423 = vsel %vm132, %v419, 0
    %v426 = vsel %vm195, %v421, 0
    %428 = vmatprep.subr.bf16.mxu0 0
    %429 = vmatpush1.bf16.msra.mxu0 %v426
    %430 = vmatprep.subr.bf16.mxu0 0
    %431 = vmatpush1.bf16.msra.mxu0 0
    %432 = vmatprep.subr.bf16.mxu0 0
    %433 = vmatpush1.bf16.msra.mxu0 0
    %434 = vmatprep.subr.bf16.mxu0 0
    %435 = vmatpush1.bf16.msra.mxu0 0
    %436 = vmatprep.subr.bf16.mxu0 0
    %437 = vmatpush1.bf16.msra.mxu0 0
    %438 = vmatprep.subr.bf16.mxu0 0
    %439 = vmatpush1.bf16.msra.mxu0 0
    %440 = vmatprep.subr.bf16.mxu0 0
    %441 = vmatpush1.bf16.msra.mxu0 0
    %442 = vmatprep.subr.bf16.mxu0 0
    %443 = vmatpush1.bf16.msra.mxu0 0
    %444 = vmatprep.subr.bf16.mxu0 0
    %445 = vmatpush1.bf16.msra.mxu0 0
    %446 = vmatprep.subr.bf16.mxu0 0
    %447 = vmatpush1.bf16.msra.mxu0 0
    %448 = vmatprep.subr.bf16.mxu0 0
    %449 = vmatpush1.bf16.msra.mxu0 0
    %450 = vmatprep.subr.bf16.mxu0 0
    %451 = vmatpush1.bf16.msra.mxu0 0
    %452 = vmatprep.subr.bf16.mxu0 0
    %453 = vmatpush1.bf16.msra.mxu0 0
    %454 = vmatprep.subr.bf16.mxu0 0
    %455 = vmatpush1.bf16.msra.mxu0 0
    %456 = vmatprep.subr.bf16.mxu0 0
    %457 = vmatpush1.bf16.msra.mxu0 0
    %458 = vmatprep.subr.bf16.mxu0 0
    %459 = vmatpush1.bf16.msra.mxu0 0
    %460 = vmatprep.mubr.bf16.mxu0 0
    %461 = vmatmul.mubr.bf16.gmra.mrb[0].mxu0 %v423
    %v462 = vpop.f32.mrb[0].mxu0
    %v463 = vadd.f32 0.0, %v462
    %v464 = vpop.f32.mrb[0].mxu0
    %v465 = vpop.f32.mrb[0].mxu0
    %v466 = vpop.f32.mrb[0].mxu0
    %467 = vdwg.mxu0
    %v468 = vrcp.pop %v418
    %v469 = vmul.f32 %v463, %v468
    %471 = vrot.lane.b32.xlu0 %v469, 16
    %v472 = vpop.permute.xlu0 %471
    %vm474 = vcmask 195712
    %475 = vst.msk [vmem:[#allocation2] sm:$0xff] %vm474, %v472
    %476 = vrot.lane.b32.xlu0 %v128, 104
    %v477 = vpop.permute.xlu0 %476
    %478 = vrot.lane.b32.xlu0 %v128, 72
    %v479 = vpop.permute.xlu0 %478
    %v481 = vsel %vm132, %v477, 0
    %v484 = vsel %vm132, %v479, 0
    %486 = vmatprep.subr.bf16.mxu0 0
    %487 = vmatpush1.bf16.xpose.msra.mxu0 %v484
    %488 = vmatprep.subr.bf16.mxu0 0
    %489 = vmatpush1.bf16.xpose.msra.mxu0 0
    %490 = vmatprep.subr.bf16.mxu0 0
    %491 = vmatpush1.bf16.xpose.msra.mxu0 0
    %492 = vmatprep.subr.bf16.mxu0 0
    %493 = vmatpush1.bf16.xpose.msra.mxu0 0
    %494 = vmatprep.subr.bf16.mxu0 0
    %495 = vmatpush1.bf16.xpose.msra.mxu0 0
    %496 = vmatprep.subr.bf16.mxu0 0
    %497 = vmatpush1.bf16.xpose.msra.mxu0 0
    %498 = vmatprep.subr.bf16.mxu0 0
    %499 = vmatpush1.bf16.xpose.msra.mxu0 0
    %500 = vmatprep.subr.bf16.mxu0 0
    %501 = vmatpush1.bf16.xpose.msra.mxu0 0
    %502 = vmatprep.subr.bf16.mxu0 0
    %503 = vmatpush1.bf16.xpose.msra.mxu0 0
    %504 = vmatprep.subr.bf16.mxu0 0
    %505 = vmatpush1.bf16.xpose.msra.mxu0 0
    %506 = vmatprep.subr.bf16.mxu0 0
    %507 = vmatpush1.bf16.xpose.msra.mxu0 0
    %508 = vmatprep.subr.bf16.mxu0 0
    %509 = vmatpush1.bf16.xpose.msra.mxu0 0
    %510 = vmatprep.subr.bf16.mxu0 0
    %511 = vmatpush1.bf16.xpose.msra.mxu0 0
    %512 = vmatprep.subr.bf16.mxu0 0
    %513 = vmatpush1.bf16.xpose.msra.mxu0 0
    %514 = vmatprep.subr.bf16.mxu0 0
    %515 = vmatpush1.bf16.xpose.msra.mxu0 0
    %516 = vmatprep.subr.bf16.mxu0 0
    %517 = vmatpush1.bf16.xpose.msra.mxu0 0
    %518 = vmatprep.mubr.bf16.mxu0 0
    %519 = vmatmul.mubr.bf16.gmra.mrb[0].mxu0 %v481
    %v520 = vpop.f32.mrb[0].mxu0
    %v521 = vadd.f32 0.0, %v520
    %v522 = vpop.f32.mrb[0].mxu0
    %v523 = vpop.f32.mrb[0].mxu0
    %v524 = vpop.f32.mrb[0].mxu0
    %525 = vdwg.mxu0
    %v526 = vmul.f32 %v521, 0.35355338
    %v527 = vsel %vm132, %v526, -inf
    %528 = vmax.xlane.f32.xlu0 %v527
    %v529 = vpop.xlane.xlu0 %528
    %v530 = vsub.f32 %v526, %v529
    %v531 = vmul.f32 %v530, 1.442695
    %v532 = vpow.pop %v531
    %v533 = vsel %vm132, %v532, 0.0
    %534 = vadd.xlane.f32.xlu0 %v533
    %v535 = vpop.xlane.xlu0 %534
    %v536 = vpack.c.bf16 %v532, %v532
    %537 = vrot.lane.b32.xlu0 %v128, 40
    %v538 = vpop.permute.xlu0 %537
    %v540 = vsel %vm132, %v536, 0
    %v543 = vsel %vm195, %v538, 0
    %545 = vmatprep.subr.bf16.mxu0 0
    %546 = vmatpush1.bf16.msra.mxu0 %v543
    %547 = vmatprep.subr.bf16.mxu0 0
    %548 = vmatpush1.bf16.msra.mxu0 0
    %549 = vmatprep.subr.bf16.mxu0 0
    %550 = vmatpush1.bf16.msra.mxu0 0
    %551 = vmatprep.subr.bf16.mxu0 0
    %552 = vmatpush1.bf16.msra.mxu0 0
    %553 = vmatprep.subr.bf16.mxu0 0
    %554 = vmatpush1.bf16.msra.mxu0 0
    %555 = vmatprep.subr.bf16.mxu0 0
    %556 = vmatpush1.bf16.msra.mxu0 0
    %557 = vmatprep.subr.bf16.mxu0 0
    %558 = vmatpush1.bf16.msra.mxu0 0
    %559 = vmatprep.subr.bf16.mxu0 0
    %560 = vmatpush1.bf16.msra.mxu0 0
    %561 = vmatprep.subr.bf16.mxu0 0
    %562 = vmatpush1.bf16.msra.mxu0 0
    %563 = vmatprep.subr.bf16.mxu0 0
    %564 = vmatpush1.bf16.msra.mxu0 0
    %565 = vmatprep.subr.bf16.mxu0 0
    %566 = vmatpush1.bf16.msra.mxu0 0
    %567 = vmatprep.subr.bf16.mxu0 0
    %568 = vmatpush1.bf16.msra.mxu0 0
    %569 = vmatprep.subr.bf16.mxu0 0
    %570 = vmatpush1.bf16.msra.mxu0 0
    %571 = vmatprep.subr.bf16.mxu0 0
    %572 = vmatpush1.bf16.msra.mxu0 0
    %573 = vmatprep.subr.bf16.mxu0 0
    %574 = vmatpush1.bf16.msra.mxu0 0
    %575 = vmatprep.subr.bf16.mxu0 0
    %576 = vmatpush1.bf16.msra.mxu0 0
    %577 = vmatprep.mubr.bf16.mxu0 0
    %578 = vmatmul.mubr.bf16.gmra.mrb[0].mxu0 %v540
    %v579 = vpop.f32.mrb[0].mxu0
    %v580 = vadd.f32 0.0, %v579
    %v581 = vpop.f32.mrb[0].mxu0
    %v582 = vpop.f32.mrb[0].mxu0
    %v583 = vpop.f32.mrb[0].mxu0
    %584 = vdwg.mxu0
    %v585 = vrcp.pop %v535
    %v586 = vmul.f32 %v580, %v585
    %588 = vrot.lane.b32.xlu0 %v586, 24
    %v589 = vpop.permute.xlu0 %588
    %vm591 = vcmask 261312
    %592 = vst.msk [vmem:[#allocation2] sm:$0xff] %vm591, %v589
    %v593 = vrot.slane %v128, 4
    %594 = vrot.lane.b32.xlu0 %v593, 96
    %v595 = vpop.permute.xlu0 %594
    %v597 = vsel %vm132, %v593, 0
    %v600 = vsel %vm132, %v595, 0
    %602 = vmatprep.subr.bf16.mxu0 0
    %603 = vmatpush1.bf16.xpose.msra.mxu0 %v600
    %604 = vmatprep.subr.bf16.mxu0 0
    %605 = vmatpush1.bf16.xpose.msra.mxu0 0
    %606 = vmatprep.subr.bf16.mxu0 0
    %607 = vmatpush1.bf16.xpose.msra.mxu0 0
    %608 = vmatprep.subr.bf16.mxu0 0
    %609 = vmatpush1.bf16.xpose.msra.mxu0 0
    %610 = vmatprep.subr.bf16.mxu0 0
    %611 = vmatpush1.bf16.xpose.msra.mxu0 0
    %612 = vmatprep.subr.bf16.mxu0 0
    %613 = vmatpush1.bf16.xpose.msra.mxu0 0
    %614 = vmatprep.subr.bf16.mxu0 0
    %615 = vmatpush1.bf16.xpose.msra.mxu0 0
    %616 = vmatprep.subr.bf16.mxu0 0
    %617 = vmatpush1.bf16.xpose.msra.mxu0 0
    %618 = vmatprep.subr.bf16.mxu0 0
    %619 = vmatpush1.bf16.xpose.msra.mxu0 0
    %620 = vmatprep.subr.bf16.mxu0 0
    %621 = vmatpush1.bf16.xpose.msra.mxu0 0
    %622 = vmatprep.subr.bf16.mxu0 0
    %623 = vmatpush1.bf16.xpose.msra.mxu0 0
    %624 = vmatprep.subr.bf16.mxu0 0
    %625 = vmatpush1.bf16.xpose.msra.mxu0 0
    %626 = vmatprep.subr.bf16.mxu0 0
    %627 = vmatpush1.bf16.xpose.msra.mxu0 0
    %628 = vmatprep.subr.bf16.mxu0 0
    %629 = vmatpush1.bf16.xpose.msra.mxu0 0
    %630 = vmatprep.subr.bf16.mxu0 0
    %631 = vmatpush1.bf16.xpose.msra.mxu0 0
    %632 = vmatprep.subr.bf16.mxu0 0
    %633 = vmatpush1.bf16.xpose.msra.mxu0 0
    %634 = vmatprep.mubr.bf16.mxu0 0
    %635 = vmatmul.mubr.bf16.gmra.mrb[0].mxu0 %v597
    %v636 = vpop.f32.mrb[0].mxu0
    %v637 = vadd.f32 0.0, %v636
    %v638 = vpop.f32.mrb[0].mxu0
    %v639 = vpop.f32.mrb[0].mxu0
    %v640 = vpop.f32.mrb[0].mxu0
    %641 = vdwg.mxu0
    %v642 = vmul.f32 %v637, 0.35355338
    %v643 = vsel %vm132, %v642, -inf
    %644 = vmax.xlane.f32.xlu0 %v643
    %v645 = vpop.xlane.xlu0 %644
    %v646 = vsub.f32 %v642, %v645
    %v647 = vmul.f32 %v646, 1.442695
    %v648 = vpow.pop %v647
    %v649 = vsel %vm132, %v648, 0.0
    %650 = vadd.xlane.f32.xlu0 %v649
    %v651 = vpop.xlane.xlu0 %650
    %v652 = vpack.c.bf16 %v648, %v648
    %653 = vrot.lane.b32.xlu0 %v593, 64
    %v654 = vpop.permute.xlu0 %653
    %v656 = vsel %vm132, %v652, 0
    %v659 = vsel %vm195, %v654, 0
    %661 = vmatprep.subr.bf16.mxu0 0
    %662 = vmatpush1.bf16.msra.mxu0 %v659
    %663 = vmatprep.subr.bf16.mxu0 0
    %664 = vmatpush1.bf16.msra.mxu0 0
    %665 = vmatprep.subr.bf16.mxu0 0
    %666 = vmatpush1.bf16.msra.mxu0 0
    %667 = vmatprep.subr.bf16.mxu0 0
    %668 = vmatpush1.bf16.msra.mxu0 0
    %669 = vmatprep.subr.bf16.mxu0 0
    %670 = vmatpush1.bf16.msra.mxu0 0
    %671 = vmatprep.subr.bf16.mxu0 0
    %672 = vmatpush1.bf16.msra.mxu0 0
    %673 = vmatprep.subr.bf16.mxu0 0
    %674 = vmatpush1.bf16.msra.mxu0 0
    %675 = vmatprep.subr.bf16.mxu0 0
    %676 = vmatpush1.bf16.msra.mxu0 0
    %677 = vmatprep.subr.bf16.mxu0 0
    %678 = vmatpush1.bf16.msra.mxu0 0
    %679 = vmatprep.subr.bf16.mxu0 0
    %680 = vmatpush1.bf16.msra.mxu0 0
    %681 = vmatprep.subr.bf16.mxu0 0
    %682 = vmatpush1.bf16.msra.mxu0 0
    %683 = vmatprep.subr.bf16.mxu0 0
    %684 = vmatpush1.bf16.msra.mxu0 0
    %685 = vmatprep.subr.bf16.mxu0 0
    %686 = vmatpush1.bf16.msra.mxu0 0
    %687 = vmatprep.subr.bf16.mxu0 0
    %688 = vmatpush1.bf16.msra.mxu0 0
    %689 = vmatprep.subr.bf16.mxu0 0
    %690 = vmatpush1.bf16.msra.mxu0 0
    %691 = vmatprep.subr.bf16.mxu0 0
    %692 = vmatpush1.bf16.msra.mxu0 0
    %693 = vmatprep.mubr.bf16.mxu0 0
    %694 = vmatmul.mubr.bf16.gmra.mrb[0].mxu0 %v656
    %v695 = vpop.f32.mrb[0].mxu0
    %v696 = vadd.f32 0.0, %v695
    %v697 = vpop.f32.mrb[0].mxu0
    %v698 = vpop.f32.mrb[0].mxu0
    %v699 = vpop.f32.mrb[0].mxu0
    %700 = vdwg.mxu0
    %v701 = vrcp.pop %v651
    %v702 = vmul.f32 %v696, %v701
    %703 = vst.msk [vmem:[#allocation2 + $0x8] sm:$0xff] %vm132, %v702
    %704 = vrot.lane.b32.xlu0 %v593, 120
    %v705 = vpop.permute.xlu0 %704
    %706 = vrot.lane.b32.xlu0 %v593, 88
    %v707 = vpop.permute.xlu0 %706
    %v709 = vsel %vm132, %v705, 0
    %v712 = vsel %vm132, %v707, 0
    %714 = vmatprep.subr.bf16.mxu0 0
    %715 = vmatpush1.bf16.xpose.msra.mxu0 %v712
    %716 = vmatprep.subr.bf16.mxu0 0
    %717 = vmatpush1.bf16.xpose.msra.mxu0 0
    %718 = vmatprep.subr.bf16.mxu0 0
    %719 = vmatpush1.bf16.xpose.msra.mxu0 0
    %720 = vmatprep.subr.bf16.mxu0 0
    %721 = vmatpush1.bf16.xpose.msra.mxu0 0
    %722 = vmatprep.subr.bf16.mxu0 0
    %723 = vmatpush1.bf16.xpose.msra.mxu0 0
    %724 = vmatprep.subr.bf16.mxu0 0
    %725 = vmatpush1.bf16.xpose.msra.mxu0 0
    %726 = vmatprep.subr.bf16.mxu0 0
    %727 = vmatpush1.bf16.xpose.msra.mxu0 0
    %728 = vmatprep.subr.bf16.mxu0 0
    %729 = vmatpush1.bf16.xpose.msra.mxu0 0
    %730 = vmatprep.subr.bf16.mxu0 0
    %731 = vmatpush1.bf16.xpose.msra.mxu0 0
    %732 = vmatprep.subr.bf16.mxu0 0
    %733 = vmatpush1.bf16.xpose.msra.mxu0 0
    %734 = vmatprep.subr.bf16.mxu0 0
    %735 = vmatpush1.bf16.xpose.msra.mxu0 0
    %736 = vmatprep.subr.bf16.mxu0 0
    %737 = vmatpush1.bf16.xpose.msra.mxu0 0
    %738 = vmatprep.subr.bf16.mxu0 0
    %739 = vmatpush1.bf16.xpose.msra.mxu0 0
    %740 = vmatprep.subr.bf16.mxu0 0
    %741 = vmatpush1.bf16.xpose.msra.mxu0 0
    %742 = vmatprep.subr.bf16.mxu0 0
    %743 = vmatpush1.bf16.xpose.msra.mxu0 0
    %744 = vmatprep.subr.bf16.mxu0 0
    %745 = vmatpush1.bf16.xpose.msra.mxu0 0
    %746 = vmatprep.mubr.bf16.mxu0 0
    %747 = vmatmul.mubr.bf16.gmra.mrb[0].mxu0 %v709
    %v748 = vpop.f32.mrb[0].mxu0
    %v749 = vadd.f32 0.0, %v748
    %v750 = vpop.f32.mrb[0].mxu0
    %v751 = vpop.f32.mrb[0].mxu0
    %v752 = vpop.f32.mrb[0].mxu0
    %753 = vdwg.mxu0
    %v754 = vmul.f32 %v749, 0.35355338
    %v755 = vsel %vm132, %v754, -inf
    %756 = vmax.xlane.f32.xlu0 %v755
    %v757 = vpop.xlane.xlu0 %756
    %v758 = vsub.f32 %v754, %v757
    %v759 = vmul.f32 %v758, 1.442695
    %v760 = vpow.pop %v759
    %v761 = vsel %vm132, %v760, 0.0
    %762 = vadd.xlane.f32.xlu0 %v761
    %v763 = vpop.xlane.xlu0 %762
    %v764 = vpack.c.bf16 %v760, %v760
    %765 = vrot.lane.b32.xlu0 %v593, 56
    %v766 = vpop.permute.xlu0 %765
    %v768 = vsel %vm132, %v764, 0
    %v771 = vsel %vm195, %v766, 0
    %773 = vmatprep.subr.bf16.mxu0 0
    %774 = vmatpush1.bf16.msra.mxu0 %v771
    %775 = vmatprep.subr.bf16.mxu0 0
    %776 = vmatpush1.bf16.msra.mxu0 0
    %777 = vmatprep.subr.bf16.mxu0 0
    %778 = vmatpush1.bf16.msra.mxu0 0
    %779 = vmatprep.subr.bf16.mxu0 0
    %780 = vmatpush1.bf16.msra.mxu0 0
    %781 = vmatprep.subr.bf16.mxu0 0
    %782 = vmatpush1.bf16.msra.mxu0 0
    %783 = vmatprep.subr.bf16.mxu0 0
    %784 = vmatpush1.bf16.msra.mxu0 0
    %785 = vmatprep.subr.bf16.mxu0 0
    %786 = vmatpush1.bf16.msra.mxu0 0
    %787 = vmatprep.subr.bf16.mxu0 0
    %788 = vmatpush1.bf16.msra.mxu0 0
    %789 = vmatprep.subr.bf16.mxu0 0
    %790 = vmatpush1.bf16.msra.mxu0 0
    %791 = vmatprep.subr.bf16.mxu0 0
    %792 = vmatpush1.bf16.msra.mxu0 0
    %793 = vmatprep.subr.bf16.mxu0 0
    %794 = vmatpush1.bf16.msra.mxu0 0
    %795 = vmatprep.subr.bf16.mxu0 0
    %796 = vmatpush1.bf16.msra.mxu0 0
    %797 = vmatprep.subr.bf16.mxu0 0
    %798 = vmatpush1.bf16.msra.mxu0 0
    %799 = vmatprep.subr.bf16.mxu0 0
    %800 = vmatpush1.bf16.msra.mxu0 0
    %801 = vmatprep.subr.bf16.mxu0 0
    %802 = vmatpush1.bf16.msra.mxu0 0
    %803 = vmatprep.subr.bf16.mxu0 0
    %804 = vmatpush1.bf16.msra.mxu0 0
    %805 = vmatprep.mubr.bf16.mxu0 0
    %806 = vmatmul.mubr.bf16.gmra.mrb[0].mxu0 %v768
    %v807 = vpop.f32.mrb[0].mxu0
    %v808 = vadd.f32 0.0, %v807
    %v809 = vpop.f32.mrb[0].mxu0
    %v810 = vpop.f32.mrb[0].mxu0
    %v811 = vpop.f32.mrb[0].mxu0
    %812 = vdwg.mxu0
    %v813 = vrcp.pop %v763
    %v814 = vmul.f32 %v808, %v813
    %816 = vrot.lane.b32.xlu0 %v814, 8
    %v817 = vpop.permute.xlu0 %816
    %819 = vst.msk [vmem:[#allocation2 + $0x8] sm:$0xff] %vm357, %v817
    %820 = vrot.lane.b32.xlu0 %v593, 112
    %v821 = vpop.permute.xlu0 %820
    %822 = vrot.lane.b32.xlu0 %v593, 80
    %v823 = vpop.permute.xlu0 %822
    %v825 = vsel %vm132, %v821, 0
    %v828 = vsel %vm132, %v823, 0
    %830 = vmatprep.subr.bf16.mxu0 0
    %831 = vmatpush1.bf16.xpose.msra.mxu0 %v828
    %832 = vmatprep.subr.bf16.mxu0 0
    %833 = vmatpush1.bf16.xpose.msra.mxu0 0
    %834 = vmatprep.subr.bf16.mxu0 0
    %835 = vmatpush1.bf16.xpose.msra.mxu0 0
    %836 = vmatprep.subr.bf16.mxu0 0
    %837 = vmatpush1.bf16.xpose.msra.mxu0 0
    %838 = vmatprep.subr.bf16.mxu0 0
    %839 = vmatpush1.bf16.xpose.msra.mxu0 0
    %840 = vmatprep.subr.bf16.mxu0 0
    %841 = vmatpush1.bf16.xpose.msra.mxu0 0
    %842 = vmatprep.subr.bf16.mxu0 0
    %843 = vmatpush1.bf16.xpose.msra.mxu0 0
    %844 = vmatprep.subr.bf16.mxu0 0
    %845 = vmatpush1.bf16.xpose.msra.mxu0 0
    %846 = vmatprep.subr.bf16.mxu0 0
    %847 = vmatpush1.bf16.xpose.msra.mxu0 0
    %848 = vmatprep.subr.bf16.mxu0 0
    %849 = vmatpush1.bf16.xpose.msra.mxu0 0
    %850 = vmatprep.subr.bf16.mxu0 0
    %851 = vmatpush1.bf16.xpose.msra.mxu0 0
    %852 = vmatprep.subr.bf16.mxu0 0
    %853 = vmatpush1.bf16.xpose.msra.mxu0 0
    %854 = vmatprep.subr.bf16.mxu0 0
    %855 = vmatpush1.bf16.xpose.msra.mxu0 0
    %856 = vmatprep.subr.bf16.mxu0 0
    %857 = vmatpush1.bf16.xpose.msra.mxu0 0
    %858 = vmatprep.subr.bf16.mxu0 0
    %859 = vmatpush1.bf16.xpose.msra.mxu0 0
    %860 = vmatprep.subr.bf16.mxu0 0
    %861 = vmatpush1.bf16.xpose.msra.mxu0 0
    %862 = vmatprep.mubr.bf16.mxu0 0
    %863 = vmatmul.mubr.bf16.gmra.mrb[0].mxu0 %v825
    %v864 = vpop.f32.mrb[0].mxu0
    %v865 = vadd.f32 0.0, %v864
    %v866 = vpop.f32.mrb[0].mxu0
    %v867 = vpop.f32.mrb[0].mxu0
    %v868 = vpop.f32.mrb[0].mxu0
    %869 = vdwg.mxu0
    %v870 = vmul.f32 %v865, 0.35355338
    %v871 = vsel %vm132, %v870, -inf
    %872 = vmax.xlane.f32.xlu0 %v871
    %v873 = vpop.xlane.xlu0 %872
    %v874 = vsub.f32 %v870, %v873
    %v875 = vmul.f32 %v874, 1.442695
    %v876 = vpow.pop %v875
    %v877 = vsel %vm132, %v876, 0.0
    %878 = vadd.xlane.f32.xlu0 %v877
    %v879 = vpop.xlane.xlu0 %878
    %v880 = vpack.c.bf16 %v876, %v876
    %881 = vrot.lane.b32.xlu0 %v593, 48
    %v882 = vpop.permute.xlu0 %881
    %v884 = vsel %vm132, %v880, 0
    %v887 = vsel %vm195, %v882, 0
    %889 = vmatprep.subr.bf16.mxu0 0
    %890 = vmatpush1.bf16.msra.mxu0 %v887
    %891 = vmatprep.subr.bf16.mxu0 0
    %892 = vmatpush1.bf16.msra.mxu0 0
    %893 = vmatprep.subr.bf16.mxu0 0
    %894 = vmatpush1.bf16.msra.mxu0 0
    %895 = vmatprep.subr.bf16.mxu0 0
    %896 = vmatpush1.bf16.msra.mxu0 0
    %897 = vmatprep.subr.bf16.mxu0 0
    %898 = vmatpush1.bf16.msra.mxu0 0
    %899 = vmatprep.subr.bf16.mxu0 0
    %900 = vmatpush1.bf16.msra.mxu0 0
    %901 = vmatprep.subr.bf16.mxu0 0
    %902 = vmatpush1.bf16.msra.mxu0 0
    %903 = vmatprep.subr.bf16.mxu0 0
    %904 = vmatpush1.bf16.msra.mxu0 0
    %905 = vmatprep.subr.bf16.mxu0 0
    %906 = vmatpush1.bf16.msra.mxu0 0
    %907 = vmatprep.subr.bf16.mxu0 0
    %908 = vmatpush1.bf16.msra.mxu0 0
    %909 = vmatprep.subr.bf16.mxu0 0
    %910 = vmatpush1.bf16.msra.mxu0 0
    %911 = vmatprep.subr.bf16.mxu0 0
    %912 = vmatpush1.bf16.msra.mxu0 0
    %913 = vmatprep.subr.bf16.mxu0 0
    %914 = vmatpush1.bf16.msra.mxu0 0
    %915 = vmatprep.subr.bf16.mxu0 0
    %916 = vmatpush1.bf16.msra.mxu0 0
    %917 = vmatprep.subr.bf16.mxu0 0
    %918 = vmatpush1.bf16.msra.mxu0 0
    %919 = vmatprep.subr.bf16.mxu0 0
    %920 = vmatpush1.bf16.msra.mxu0 0
    %921 = vmatprep.mubr.bf16.mxu0 0
    %922 = vmatmul.mubr.bf16.gmra.mrb[0].mxu0 %v884
    %v923 = vpop.f32.mrb[0].mxu0
    %v924 = vadd.f32 0.0, %v923
    %v925 = vpop.f32.mrb[0].mxu0
    %v926 = vpop.f32.mrb[0].mxu0
    %v927 = vpop.f32.mrb[0].mxu0
    %928 = vdwg.mxu0
    %v929 = vrcp.pop %v879
    %v930 = vmul.f32 %v924, %v929
    %932 = vrot.lane.b32.xlu0 %v930, 16
    %v933 = vpop.permute.xlu0 %932
    %935 = vst.msk [vmem:[#allocation2 + $0x8] sm:$0xff] %vm474, %v933
    %936 = vrot.lane.b32.xlu0 %v593, 104
    %v937 = vpop.permute.xlu0 %936
    %938 = vrot.lane.b32.xlu0 %v593, 72
    %v939 = vpop.permute.xlu0 %938
    %v941 = vsel %vm132, %v937, 0
    %v944 = vsel %vm132, %v939, 0
    %946 = vmatprep.subr.bf16.mxu0 0
    %947 = vmatpush1.bf16.xpose.msra.mxu0 %v944
    %948 = vmatprep.subr.bf16.mxu0 0
    %949 = vmatpush1.bf16.xpose.msra.mxu0 0
    %950 = vmatprep.subr.bf16.mxu0 0
    %951 = vmatpush1.bf16.xpose.msra.mxu0 0
    %952 = vmatprep.subr.bf16.mxu0 0
    %953 = vmatpush1.bf16.xpose.msra.mxu0 0
    %954 = vmatprep.subr.bf16.mxu0 0
    %955 = vmatpush1.bf16.xpose.msra.mxu0 0
    %956 = vmatprep.subr.bf16.mxu0 0
    %957 = vmatpush1.bf16.xpose.msra.mxu0 0
    %958 = vmatprep.subr.bf16.mxu0 0
    %959 = vmatpush1.bf16.xpose.msra.mxu0 0
    %960 = vmatprep.subr.bf16.mxu0 0
    %961 = vmatpush1.bf16.xpose.msra.mxu0 0
    %962 = vmatprep.subr.bf16.mxu0 0
    %963 = vmatpush1.bf16.xpose.msra.mxu0 0
    %964 = vmatprep.subr.bf16.mxu0 0
    %965 = vmatpush1.bf16.xpose.msra.mxu0 0
    %966 = vmatprep.subr.bf16.mxu0 0
    %967 = vmatpush1.bf16.xpose.msra.mxu0 0
    %968 = vmatprep.subr.bf16.mxu0 0
    %969 = vmatpush1.bf16.xpose.msra.mxu0 0
    %970 = vmatprep.subr.bf16.mxu0 0
    %971 = vmatpush1.bf16.xpose.msra.mxu0 0
    %972 = vmatprep.subr.bf16.mxu0 0
    %973 = vmatpush1.bf16.xpose.msra.mxu0 0
    %974 = vmatprep.subr.bf16.mxu0 0
    %975 = vmatpush1.bf16.xpose.msra.mxu0 0
    %976 = vmatprep.subr.bf16.mxu0 0
    %977 = vmatpush1.bf16.xpose.msra.mxu0 0
    %978 = vmatprep.mubr.bf16.mxu0 0
    %979 = vmatmul.mubr.bf16.gmra.mrb[0].mxu0 %v941
    %v980 = vpop.f32.mrb[0].mxu0
    %v981 = vadd.f32 0.0, %v980
    %v982 = vpop.f32.mrb[0].mxu0
    %v983 = vpop.f32.mrb[0].mxu0
    %v984 = vpop.f32.mrb[0].mxu0
    %985 = vdwg.mxu0
    %v986 = vmul.f32 %v981, 0.35355338
    %v987 = vsel %vm132, %v986, -inf
    %988 = vmax.xlane.f32.xlu0 %v987
    %v989 = vpop.xlane.xlu0 %988
    %v990 = vsub.f32 %v986, %v989
    %v991 = vmul.f32 %v990, 1.442695
    %v992 = vpow.pop %v991
    %v993 = vsel %vm132, %v992, 0.0
    %994 = vadd.xlane.f32.xlu0 %v993
    %v995 = vpop.xlane.xlu0 %994
    %v996 = vpack.c.bf16 %v992, %v992
    %997 = vrot.lane.b32.xlu0 %v593, 40
    %v998 = vpop.permute.xlu0 %997
    %v1000 = vsel %vm132, %v996, 0
    %v1003 = vsel %vm195, %v998, 0
    %1005 = vmatprep.subr.bf16.mxu0 0
    %1006 = vmatpush1.bf16.msra.mxu0 %v1003
    %1007 = vmatprep.subr.bf16.mxu0 0
    %1008 = vmatpush1.bf16.msra.mxu0 0
    %1009 = vmatprep.subr.bf16.mxu0 0
    %1010 = vmatpush1.bf16.msra.mxu0 0
    %1011 = vmatprep.subr.bf16.mxu0 0
    %1012 = vmatpush1.bf16.msra.mxu0 0
    %1013 = vmatprep.subr.bf16.mxu0 0
    %1014 = vmatpush1.bf16.msra.mxu0 0
    %1015 = vmatprep.subr.bf16.mxu0 0
    %1016 = vmatpush1.bf16.msra.mxu0 0
    %1017 = vmatprep.subr.bf16.mxu0 0
    %1018 = vmatpush1.bf16.msra.mxu0 0
    %1019 = vmatprep.subr.bf16.mxu0 0
    %1020 = vmatpush1.bf16.msra.mxu0 0
    %1021 = vmatprep.subr.bf16.mxu0 0
    %1022 = vmatpush1.bf16.msra.mxu0 0
    %1023 = vmatprep.subr.bf16.mxu0 0
    %1024 = vmatpush1.bf16.msra.mxu0 0
    %1025 = vmatprep.subr.bf16.mxu0 0
    %1026 = vmatpush1.bf16.msra.mxu0 0
    %1027 = vmatprep.subr.bf16.mxu0 0
    %1028 = vmatpush1.bf16.msra.mxu0 0
    %1029 = vmatprep.subr.bf16.mxu0 0
    %1030 = vmatpush1.bf16.msra.mxu0 0
    %1031 = vmatprep.subr.bf16.mxu0 0
    %1032 = vmatpush1.bf16.msra.mxu0 0
    %1033 = vmatprep.subr.bf16.mxu0 0
    %1034 = vmatpush1.bf16.msra.mxu0 0
    %1035 = vmatprep.subr.bf16.mxu0 0
    %1036 = vmatpush1.bf16.msra.mxu0 0
    %1037 = vmatprep.mubr.bf16.mxu0 0
    %1038 = vmatmul.mubr.bf16.gmra.mrb[0].mxu0 %v1000
    %v1039 = vpop.f32.mrb[0].mxu0
    %v1040 = vadd.f32 0.0, %v1039
    %v1041 = vpop.f32.mrb[0].mxu0
    %v1042 = vpop.f32.mrb[0].mxu0
    %v1043 = vpop.f32.mrb[0].mxu0
    %1044 = vdwg.mxu0
    %v1045 = vrcp.pop %v995
    %v1046 = vmul.f32 %v1040, %v1045
    %1048 = vrot.lane.b32.xlu0 %v1046, 24
    %v1049 = vpop.permute.xlu0 %1048
    %1051 = vst.msk [vmem:[#allocation2 + $0x8] sm:$0xff] %vm591, %v1049
    %v1052 = vld [vmem:[#allocation2] sm:$0xff]
    %v1053 = vld [vmem:[#allocation2 + $0x8] sm:$0xff]
    %v1054 = vpack.c.bf16 %v1053, %v1052
    %v1055 = vld [vmem:[#allocation8] sm:$0xf]
    %v1056 = vld [vmem:[#allocation8 + $0x4] sm:$0xf]
    %v1057 = vld [vmem:[#allocation8 + $0x8] sm:$0xf]
    %v1058 = vld [vmem:[#allocation8 + $0xc] sm:$0xf]
    %v1059 = vld [vmem:[%s3] sm:$0x1]
    %v1061 = vlaneseq
    %v1062 = vshrl.u32 %v1061, 7
    %v1063 = vsub.s32 0, %v1062
    %v1064 = vrot.slane %v1059, %v1063
    %v1070 = vunpack.c.l.b16 %v1055
    %v1071 = vunpack.c.l.b16 %v1056
    %v1072 = vunpack.c.l.b16 %v1057
    %v1073 = vunpack.c.l.b16 %v1058
    %v1074 = vpack.c.b16 %v1071, %v1070
    %v1075 = vpack.c.b16 %v1073, %v1072
    %v1079 = vsel %vm83, %v1054, 0
    %1081 = vmatprep.subr.bf16.mxu0 0
    %1082 = vmatpush1.bf16.msra.mxu0 %v1074
    %1083 = vmatprep.subr.bf16.mxu0 0
    %1084 = vmatpush1.bf16.msra.mxu0 %v1075
    %1085 = vmatprep.subr.bf16.mxu0 0
    %1086 = vmatpush1.bf16.msra.mxu0 0
    %1087 = vmatprep.subr.bf16.mxu0 0
    %1088 = vmatpush1.bf16.msra.mxu0 0
    %1089 = vmatprep.subr.bf16.mxu0 0
    %1090 = vmatpush1.bf16.msra.mxu0 0
    %1091 = vmatprep.subr.bf16.mxu0 0
    %1092 = vmatpush1.bf16.msra.mxu0 0
    %1093 = vmatprep.subr.bf16.mxu0 0
    %1094 = vmatpush1.bf16.msra.mxu0 0
    %1095 = vmatprep.subr.bf16.mxu0 0
    %1096 = vmatpush1.bf16.msra.mxu0 0
    %1097 = vmatprep.subr.bf16.mxu0 0
    %1098 = vmatpush1.bf16.msra.mxu0 0
    %1099 = vmatprep.subr.bf16.mxu0 0
    %1100 = vmatpush1.bf16.msra.mxu0 0
    %1101 = vmatprep.subr.bf16.mxu0 0
    %1102 = vmatpush1.bf16.msra.mxu0 0
    %1103 = vmatprep.subr.bf16.mxu0 0
    %1104 = vmatpush1.bf16.msra.mxu0 0
    %1105 = vmatprep.subr.bf16.mxu0 0
    %1106 = vmatpush1.bf16.msra.mxu0 0
    %1107 = vmatprep.subr.bf16.mxu0 0
    %1108 = vmatpush1.bf16.msra.mxu0 0
    %1109 = vmatprep.subr.bf16.mxu0 0
    %1110 = vmatpush1.bf16.msra.mxu0 0
    %1111 = vmatprep.subr.bf16.mxu0 0
    %1112 = vmatpush1.bf16.msra.mxu0 0
    %1113 = vmatprep.mubr.bf16.mxu0 0
    %1114 = vmatmul.mubr.bf16.gmra.mrb[0].mxu0 %v1079
    %v1115 = vpop.f32.mrb[0].mxu0
    %v1116 = vadd.f32 %v1064, %v1115
    %v1117 = vpop.f32.mrb[0].mxu0
    %v1118 = vpop.f32.mrb[0].mxu0
    %v1119 = vadd.f32 %v1064, %v1118
    %v1120 = vpop.f32.mrb[0].mxu0
    %1121 = vdwg.mxu0
    %1122 = vst.msk [vmem:[#allocation9] sm:$0xff] %vm83, %v1116
    %1123 = vst.msk [vmem:[#allocation9 + $0x8] sm:$0xff] %vm83, %v1119
    // Predicated region
    $region30: #{tpu_custom_call.1} parent=1 // pred_check
      _
    $region31: #{tpu_custom_call.1} parent=1 // pred_check_branch
      %1125 = sbr.rel (0) target = $region33
    $region32: #{tpu_custom_call.1} parent=1 // pred_region
      %s1127 = ssub.s32 256, 256
      %1128 = vsyncadd [#allocation5], %s1127
      %s1129 = sshll.u32 [#allocation9], 4
      %s1130 = int_to_ptr.vmem [resolvable:$true] %s1129
      %1135 = dma.vmem_to_hbm [thread:$0]  %s1130, 256, %s4, [#allocation5], 128, 128, 8
    $region33: #{tpu_custom_call.1} parent=1 // pred_fallthru
      _
    // Predicated region
    $region34: #{tpu_custom_call.1} parent=1 // pred_check
      _
    $region35: #{tpu_custom_call.1} parent=1 // pred_check_branch
      %1137 = sbr.rel (0) target = $region37
    $region36: #{tpu_custom_call.1} parent=1 // pred_region
      %1138 = dma.done [#allocation5], 256
    $region37: #{tpu_custom_call.1} parent=1 // pred_fallthru
      _
    %1139 = vsyncpa [#allocation4], 1
    %1140 = vsyncpa [#allocation7], 1
    %1141 = vsyncpa [#allocation5], 1

</llo_original>
